<compile_context>
chip_gen: v6e
topology: v6e:2x2x1
jax: 0.10.0
libtpu: 0.0.40
codegen_flags: <defaults>
</compile_context>

<pallas_src>
import functools

import jax
import jax.numpy as jnp
from jax.experimental import pallas as pl
from jax.experimental.pallas import tpu as pltpu

LN_EPS = 1e-5          # torch.nn.LayerNorm default
LEAKY_SLOPE = 0.05     # nn.LeakyReLU(negative_slope=0.05)


def _layernorm(x, gamma, beta):
    mu = jnp.mean(x, axis=-1, keepdims=True)
    var = jnp.mean((x - mu) ** 2, axis=-1, keepdims=True)
    return (x - mu) * jax.lax.rsqrt(var + LN_EPS) * gamma + beta


# ------------------------------ fused kernel ---------------------------------
def _fused_premodel_kernel(a_ref, h_ref, w_in_ref, w_t1_ref, w_t2_ref,
                           w_gcn_ref, w_pool_ref, w_self_ref, w_neigh_ref,
                           w_out_ref, vecs_ref,
                           score_ref, z_ref,
                           *, hidden, num_layers, out_size, n_nodes):
    f32 = jnp.float32
    bf16 = jnp.bfloat16
    H = hidden
    two_h = 2 * hidden

    A = a_ref[...]            # [N, N] float32
    vecs = vecs_ref[...]      # [9 + 4L, 2H] packed biases / LN params / gate

    def vec(row, width):
        return vecs[row:row + 1, :width]        # [1, width]

    # ---- in_linear[g_name] -> trans_linear_1 -> LeakyReLU -> trans_linear_2 ----
    h = jnp.dot(h_ref[...], w_in_ref[...], preferred_element_type=f32) + vec(0, H)
    h = jnp.dot(h.astype(bf16), w_t1_ref[...], preferred_element_type=f32) + vec(1, H)
    h = jnp.where(h >= 0.0, h, LEAKY_SLOPE * h)
    h = jnp.dot(h.astype(bf16), w_t2_ref[...], preferred_element_type=f32) + vec(2, H)

    # ---- GCN: GraphConv(norm='both') + LayerNorm; loc_h = GCN(g, h) - h ----
    # DGL clamps both degrees with clamp(min=1).
    deg_in = jnp.maximum(jnp.sum(A, axis=1, keepdims=True), 1.0)     # [N, 1]
    deg_out = jnp.maximum(jnp.sum(A, axis=0, keepdims=True), 1.0)    # [1, N]
    ahat = A * jax.lax.rsqrt(deg_in) * jax.lax.rsqrt(deg_out)
    agg = jnp.dot(ahat, h, preferred_element_type=f32)
    gcn = (jnp.dot(agg.astype(bf16), w_gcn_ref[...], preferred_element_type=f32)
           + vec(3, H))
    gcn = _layernorm(gcn, vec(4, H), vec(5, H))
    loc_h = gcn - h

    # ---- GlobalAttentionPooling: softmax(gate_nn(h)) weighted sum over nodes ----
    gate = jnp.sum(h * vec(6, H), axis=-1, keepdims=True) + vec(7, 1)    # [N, 1]
    gate = gate - jnp.max(gate, axis=0, keepdims=True)
    e = jnp.exp(gate)
    alpha = e / jnp.sum(e, axis=0, keepdims=True)
    pooled = jnp.sum(alpha * h, axis=0, keepdims=True)                   # [1, H]
    glo_h = pooled - h

    # ---- Z = cat([loc_h, glo_h], dim=1): write halves of the lane-dense slab ----
    z_ref[:, :H] = loc_h
    z_ref[:, H:] = glo_h
    x = z_ref[...]                                                       # [N, 2H]

    # ---- Encoder: num_layers x (SAGEConv 'pool' + residual + LayerNorm) ----
    for layer in range(num_layers):
        base = 8 + 4 * layer
        # m_j = relu(h_j @ W_pool + b_pool)
        m = (jnp.dot(x.astype(bf16), w_pool_ref[layer],
                     preferred_element_type=f32) + vec(base + 0, two_h))
        m = jnp.maximum(m, 0.0)
        # neigh_i = max over in-neighbors j of m_j.  Running max over source
        # nodes keeps VMEM at O(N*D).  Init with 0 is exact: m >= 0 after the
        # ReLU, and DGL fills 0 for zero-in-degree nodes.
        neigh = jnp.zeros((n_nodes, two_h), dtype=f32)
        for j in range(n_nodes):
            neigh = jnp.maximum(
                neigh, jnp.where(A[:, j:j + 1] > 0.0, m[j:j + 1, :], 0.0))
        conv = (jnp.dot(x.astype(bf16), w_self_ref[layer],
                        preferred_element_type=f32)
                + jnp.dot(neigh.astype(bf16), w_neigh_ref[layer],
                          preferred_element_type=f32)
                + vec(base + 1, two_h))
        x = _layernorm(conv + x, vec(base + 2, two_h), vec(base + 3, two_h))
        if layer < num_layers - 1:
            x = jnp.maximum(x, 0.0)
        # TODO(synk): F.dropout between encoder layers is identity in eval mode; omitted.

    # ---- out_linear ----
    score_ref[...] = (jnp.dot(x, w_out_ref[...], preferred_element_type=f32)
                      + vec(8 + 4 * num_layers, out_size))


# ------------------------------ pallas wrapper --------------------------------
def _full_spec(shape):
    nd = len(shape)
    return pl.BlockSpec(shape, lambda i: (0,) * nd)


def premodel_forward(params, g_name, A, h, *, hidden, num_layers, out_size):
    n = h.shape[0]
    args = (A, h,
            params["w_in"][g_name], params["w_t1"], params["w_t2"],
            params["w_gcn"], params["w_pool"], params["w_self"],
            params["w_neigh"], params["w_out"], params["vecs"][g_name])
    out_shape = (jax.ShapeDtypeStruct((n, out_size), jnp.float32),
                 jax.ShapeDtypeStruct((n, 2 * hidden), jnp.float32))
    kernel = functools.partial(_fused_premodel_kernel, hidden=hidden,
                               num_layers=num_layers, out_size=out_size,
                               n_nodes=n)
    score, z = pl.pallas_call(
        kernel,
        grid=(1,),
        in_specs=[_full_spec(a.shape) for a in args],
        out_specs=[_full_spec(s.shape) for s in out_shape],
        out_shape=out_shape,
        compiler_params=pltpu.CompilerParams(
            dimension_semantics=("arbitrary",)),
    )(*args)
    return score, z


# -------------------------------- parameters ----------------------------------
def init_params(key, hidden, num_layers, out_size):
    H = hidden
    two_h = 2 * hidden
    state = {"key": key}

    def rnd(shape, scale=0.1, dtype=jnp.float32):
        state["key"], sub = jax.random.split(state["key"])
        return (scale * jax.random.normal(sub, shape, dtype=jnp.float32)).astype(dtype)

    def pad_row(v):
        v = jnp.asarray(v, jnp.float32).reshape(-1)
        row = jnp.zeros((1, two_h), jnp.float32)
        return row.at[0, :v.shape[0]].set(v)

    in_dims = {"tsocial": 10, "dgraphfin": 17, "tfinance": 10}
    w_in = {name: rnd((d, H)) for name, d in in_dims.items()}          # f32
    b_in = {name: rnd((H,)) for name in in_dims}

    w_t1, b_t1 = rnd((H, H), dtype=jnp.bfloat16), rnd((H,))
    w_t2, b_t2 = rnd((H, H), dtype=jnp.bfloat16), rnd((H,))
    w_gcn, b_gcn = rnd((H, H), dtype=jnp.bfloat16), rnd((H,))
    g_gcn, be_gcn = jnp.ones((H,), jnp.float32), jnp.zeros((H,), jnp.float32)
    w_gate, b_gate = rnd((H,)), rnd((1,))
    w_out, b_out = rnd((two_h, out_size)), rnd((out_size,))

    # Stacked per-layer SAGE weights: [L, 2H, 2H] in bf16.
    w_pool = rnd((num_layers, two_h, two_h), dtype=jnp.bfloat16)
    w_self = rnd((num_layers, two_h, two_h), dtype=jnp.bfloat16)
    w_neigh = rnd((num_layers, two_h, two_h), dtype=jnp.bfloat16)
    b_pool = rnd((num_layers, two_h))
    sage_b = rnd((num_layers, two_h))
    gamma = jnp.ones((num_layers, two_h), jnp.float32)
    beta = jnp.zeros((num_layers, two_h), jnp.float32)

    # Packed small-vector slab: row layout matches `vec(row, width)` in kernel.
    common = [b_t1, b_t2, b_gcn, g_gcn, be_gcn, w_gate, b_gate]        # rows 1..7
    sage_rows = []
    for l in range(num_layers):                                        # rows 8 + 4l ..
        sage_rows += [b_pool[l], sage_b[l], gamma[l], beta[l]]
    tail = [b_out]                                                     # row 8 + 4L

    def pack(rows):
        return jnp.concatenate([pad_row(r) for r in rows], axis=0)

    vecs = {name: pack([b_in[name]] + common + sage_rows + tail)       # row 0 = b_in
            for name in in_dims}

    return {"w_in": w_in, "vecs": vecs,
            "w_t1": w_t1, "w_t2": w_t2, "w_gcn": w_gcn,
            "w_pool": w_pool, "w_self": w_self, "w_neigh": w_neigh,
            "w_out": w_out}


# ----------------------------------- main --------------------------------------
if __name__ == "__main__":
    N = 8                # nodes
    HIDDEN = 64          # hidden_size (trans_linear_1 is Linear(64, 64))
    NUM_LAYERS = 2
    OUT_SIZE = 4
    G_NAME = "tfinance"  # -> 10 input features

    key = jax.random.PRNGKey(0)
    kp, kh = jax.random.split(key)
    params = init_params(kp, HIDDEN, NUM_LAYERS, OUT_SIZE)

    # node features [N, 10]
    h = jax.random.normal(kh, (N, 10), dtype=jnp.float32)

    # deterministic small graph: self-loops + directed ring + two extra edges
    A = jnp.eye(N, dtype=jnp.float32)
    src = jnp.arange(N)
    dst = (src + 1) % N
    A = A.at[dst, src].set(1.0)
    A = A.at[0, 4].set(1.0)
    A = A.at[3, 6].set(1.0)

    score, Z = premodel_forward(params, G_NAME, A, h,
                                hidden=HIDDEN, num_layers=NUM_LAYERS,
                                out_size=OUT_SIZE)
    jax.block_until_ready((score, Z))
    assert score.shape == (N, OUT_SIZE) and Z.shape == (N, 2 * HIDDEN)
    print("KERNEL_OK")
</pallas_src>

<mosaic_0001>
module attributes {stable_mosaic.version = 11 : i64} {
  func.func @_fused_premodel_kernel(%arg0: i32, %arg1: memref<8x8xf32, #tpu.memory_space<vmem>>, %arg2: memref<8x10xf32, #tpu.memory_space<vmem>>, %arg3: memref<10x64xf32, #tpu.memory_space<vmem>>, %arg4: memref<64x64xbf16, #tpu.memory_space<vmem>>, %arg5: memref<64x64xbf16, #tpu.memory_space<vmem>>, %arg6: memref<64x64xbf16, #tpu.memory_space<vmem>>, %arg7: memref<2x128x128xbf16, #tpu.memory_space<vmem>>, %arg8: memref<2x128x128xbf16, #tpu.memory_space<vmem>>, %arg9: memref<2x128x128xbf16, #tpu.memory_space<vmem>>, %arg10: memref<128x4xf32, #tpu.memory_space<vmem>>, %arg11: memref<17x128xf32, #tpu.memory_space<vmem>>, %arg12: memref<8x4xf32, #tpu.memory_space<vmem>>, %arg13: memref<8x128xf32, #tpu.memory_space<vmem>>) attributes {dimension_semantics = [#tpu.dimension_semantics<arbitrary>], iteration_bounds = array<i64: 1>, scalar_prefetch = 0 : i64, scratch_operands = 0 : i64, tpu.core_type = #tpu.core_type<tc>, window_params = [{pipeline_mode = #tpu.pipeline_mode<synchronous>, transform_indices = @transform_0, window_bounds = array<i64: 8, 8>}, {pipeline_mode = #tpu.pipeline_mode<synchronous>, transform_indices = @transform_1, window_bounds = array<i64: 8, 10>}, {pipeline_mode = #tpu.pipeline_mode<synchronous>, transform_indices = @transform_2, window_bounds = array<i64: 10, 64>}, {pipeline_mode = #tpu.pipeline_mode<synchronous>, transform_indices = @transform_3, window_bounds = array<i64: 64, 64>}, {pipeline_mode = #tpu.pipeline_mode<synchronous>, transform_indices = @transform_4, window_bounds = array<i64: 64, 64>}, {pipeline_mode = #tpu.pipeline_mode<synchronous>, transform_indices = @transform_5, window_bounds = array<i64: 64, 64>}, {pipeline_mode = #tpu.pipeline_mode<synchronous>, transform_indices = @transform_6, window_bounds = array<i64: 2, 128, 128>}, {pipeline_mode = #tpu.pipeline_mode<synchronous>, transform_indices = @transform_7, window_bounds = array<i64: 2, 128, 128>}, {pipeline_mode = #tpu.pipeline_mode<synchronous>, transform_indices = @transform_8, window_bounds = array<i64: 2, 128, 128>}, {pipeline_mode = #tpu.pipeline_mode<synchronous>, transform_indices = @transform_9, window_bounds = array<i64: 128, 4>}, {pipeline_mode = #tpu.pipeline_mode<synchronous>, transform_indices = @transform_10, window_bounds = array<i64: 17, 128>}, {pipeline_mode = #tpu.pipeline_mode<synchronous>, transform_indices = @transform_11, window_bounds = array<i64: 8, 4>}, {pipeline_mode = #tpu.pipeline_mode<synchronous>, transform_indices = @transform_12, window_bounds = array<i64: 8, 128>}]} {
    %c0 = arith.constant 0 : index
    %c0_0 = arith.constant 0 : index
    %0 = vector.load %arg1[%c0, %c0_0] : memref<8x8xf32, #tpu.memory_space<vmem>>, vector<8x8xf32>
    %c0_1 = arith.constant 0 : index
    %c0_2 = arith.constant 0 : index
    %1 = vector.load %arg11[%c0_1, %c0_2] : memref<17x128xf32, #tpu.memory_space<vmem>>, vector<17x128xf32>
    %c0_3 = arith.constant 0 : index
    %c0_4 = arith.constant 0 : index
    %2 = vector.load %arg2[%c0_3, %c0_4] : memref<8x10xf32, #tpu.memory_space<vmem>>, vector<8x10xf32>
    %c0_5 = arith.constant 0 : index
    %c0_6 = arith.constant 0 : index
    %3 = vector.load %arg3[%c0_5, %c0_6] : memref<10x64xf32, #tpu.memory_space<vmem>>, vector<10x64xf32>
    %cst = arith.constant dense<0.000000e+00> : vector<8x64xf32>
    %4 = tpu.matmul %2, %3, %cst {dimension_numbers = #tpu.dot_dimension_numbers<[1], [0], [0], [1], [0, 0, 1, 1], [], []>} : vector<8x10xf32>, vector<10x64xf32>, vector<8x64xf32> -> vector<8x64xf32>
    %5 = vector.extract_strided_slice %1 {offsets = [0, 0], sizes = [1, 64], strides = [1, 1]} : vector<17x128xf32> to vector<1x64xf32>
    %6 = vector.broadcast %5 : vector<1x64xf32> to vector<8x64xf32>
    %7 = arith.addf %4, %6 : vector<8x64xf32>
    %8 = arith.truncf %7 : vector<8x64xf32> to vector<8x64xbf16>
    %c0_7 = arith.constant 0 : index
    %c0_8 = arith.constant 0 : index
    %9 = vector.load %arg4[%c0_7, %c0_8] : memref<64x64xbf16, #tpu.memory_space<vmem>>, vector<64x64xbf16>
    %cst_9 = arith.constant dense<0.000000e+00> : vector<8x64xf32>
    %10 = tpu.matmul %8, %9, %cst_9 {dimension_numbers = #tpu.dot_dimension_numbers<[1], [0], [0], [1], [0, 0, 1, 1], [], []>} : vector<8x64xbf16>, vector<64x64xbf16>, vector<8x64xf32> -> vector<8x64xf32>
    %11 = vector.extract_strided_slice %1 {offsets = [1, 0], sizes = [1, 64], strides = [1, 1]} : vector<17x128xf32> to vector<1x64xf32>
    %12 = vector.broadcast %11 : vector<1x64xf32> to vector<8x64xf32>
    %13 = arith.addf %10, %12 : vector<8x64xf32>
    %cst_10 = arith.constant 0.000000e+00 : f32
    %14 = vector.broadcast %cst_10 : f32 to vector<8x64xf32>
    %15 = arith.cmpf oge, %13, %14 : vector<8x64xf32>
    %cst_11 = arith.constant 5.000000e-02 : f32
    %16 = vector.broadcast %cst_11 : f32 to vector<8x64xf32>
    %17 = arith.mulf %16, %13 : vector<8x64xf32>
    %18 = arith.select %15, %13, %17 : vector<8x64xi1>, vector<8x64xf32>
    %19 = arith.truncf %18 : vector<8x64xf32> to vector<8x64xbf16>
    %c0_12 = arith.constant 0 : index
    %c0_13 = arith.constant 0 : index
    %20 = vector.load %arg5[%c0_12, %c0_13] : memref<64x64xbf16, #tpu.memory_space<vmem>>, vector<64x64xbf16>
    %cst_14 = arith.constant dense<0.000000e+00> : vector<8x64xf32>
    %21 = tpu.matmul %19, %20, %cst_14 {dimension_numbers = #tpu.dot_dimension_numbers<[1], [0], [0], [1], [0, 0, 1, 1], [], []>} : vector<8x64xbf16>, vector<64x64xbf16>, vector<8x64xf32> -> vector<8x64xf32>
    %22 = vector.extract_strided_slice %1 {offsets = [2, 0], sizes = [1, 64], strides = [1, 1]} : vector<17x128xf32> to vector<1x64xf32>
    %23 = vector.broadcast %22 : vector<1x64xf32> to vector<8x64xf32>
    %24 = arith.addf %21, %23 : vector<8x64xf32>
    %cst_15 = arith.constant dense<0.000000e+00> : vector<8xf32>
    %25 = vector.multi_reduction <add>, %0, %cst_15 [1] : vector<8x8xf32> to vector<8xf32>
    %26 = vector.shape_cast %25 : vector<8xf32> to vector<8x1xf32>
    %cst_16 = arith.constant 1.000000e+00 : f32
    %27 = vector.broadcast %cst_16 : f32 to vector<8x1xf32>
    %28 = arith.maximumf %26, %27 : vector<8x1xf32>
    %cst_17 = arith.constant dense<0.000000e+00> : vector<8xf32>
    %29 = vector.multi_reduction <add>, %0, %cst_17 [0] : vector<8x8xf32> to vector<8xf32>
    %30 = vector.shape_cast %29 : vector<8xf32> to vector<1x8xf32>
    %cst_18 = arith.constant 1.000000e+00 : f32
    %31 = vector.broadcast %cst_18 : f32 to vector<1x8xf32>
    %32 = arith.maximumf %30, %31 : vector<1x8xf32>
    %33 = math.rsqrt %28 : vector<8x1xf32>
    %34 = vector.broadcast %33 : vector<8x1xf32> to vector<8x8xf32>
    %35 = arith.mulf %0, %34 : vector<8x8xf32>
    %36 = math.rsqrt %32 : vector<1x8xf32>
    %37 = vector.broadcast %36 : vector<1x8xf32> to vector<8x8xf32>
    %38 = arith.mulf %35, %37 : vector<8x8xf32>
    %cst_19 = arith.constant dense<0.000000e+00> : vector<8x64xf32>
    %39 = tpu.matmul %38, %24, %cst_19 {dimension_numbers = #tpu.dot_dimension_numbers<[1], [0], [0], [1], [0, 0, 1, 1], [], []>} : vector<8x8xf32>, vector<8x64xf32>, vector<8x64xf32> -> vector<8x64xf32>
    %40 = arith.truncf %39 : vector<8x64xf32> to vector<8x64xbf16>
    %c0_20 = arith.constant 0 : index
    %c0_21 = arith.constant 0 : index
    %41 = vector.load %arg6[%c0_20, %c0_21] : memref<64x64xbf16, #tpu.memory_space<vmem>>, vector<64x64xbf16>
    %cst_22 = arith.constant dense<0.000000e+00> : vector<8x64xf32>
    %42 = tpu.matmul %40, %41, %cst_22 {dimension_numbers = #tpu.dot_dimension_numbers<[1], [0], [0], [1], [0, 0, 1, 1], [], []>} : vector<8x64xbf16>, vector<64x64xbf16>, vector<8x64xf32> -> vector<8x64xf32>
    %43 = vector.extract_strided_slice %1 {offsets = [3, 0], sizes = [1, 64], strides = [1, 1]} : vector<17x128xf32> to vector<1x64xf32>
    %44 = vector.broadcast %43 : vector<1x64xf32> to vector<8x64xf32>
    %45 = arith.addf %42, %44 : vector<8x64xf32>
    %46 = vector.extract_strided_slice %1 {offsets = [4, 0], sizes = [1, 64], strides = [1, 1]} : vector<17x128xf32> to vector<1x64xf32>
    %47 = vector.extract_strided_slice %1 {offsets = [5, 0], sizes = [1, 64], strides = [1, 1]} : vector<17x128xf32> to vector<1x64xf32>
    %cst_23 = arith.constant dense<0.000000e+00> : vector<8xf32>
    %48 = vector.multi_reduction <add>, %45, %cst_23 [1] : vector<8x64xf32> to vector<8xf32>
    %49 = vector.shape_cast %48 : vector<8xf32> to vector<8x1xf32>
    %cst_24 = arith.constant 6.400000e+01 : f32
    %50 = vector.broadcast %cst_24 : f32 to vector<8x1xf32>
    %51 = arith.divf %49, %50 : vector<8x1xf32>
    %52 = vector.broadcast %51 : vector<8x1xf32> to vector<8x64xf32>
    %53 = arith.subf %45, %52 : vector<8x64xf32>
    %54 = arith.mulf %53, %53 : vector<8x64xf32>
    %cst_25 = arith.constant dense<0.000000e+00> : vector<8xf32>
    %55 = vector.multi_reduction <add>, %54, %cst_25 [1] : vector<8x64xf32> to vector<8xf32>
    %56 = vector.shape_cast %55 : vector<8xf32> to vector<8x1xf32>
    %cst_26 = arith.constant 6.400000e+01 : f32
    %57 = vector.broadcast %cst_26 : f32 to vector<8x1xf32>
    %58 = arith.divf %56, %57 : vector<8x1xf32>
    %59 = vector.broadcast %51 : vector<8x1xf32> to vector<8x64xf32>
    %60 = arith.subf %45, %59 : vector<8x64xf32>
    %cst_27 = arith.constant 9.99999974E-6 : f32
    %61 = vector.broadcast %cst_27 : f32 to vector<8x1xf32>
    %62 = arith.addf %58, %61 : vector<8x1xf32>
    %63 = math.rsqrt %62 : vector<8x1xf32>
    %64 = vector.broadcast %63 : vector<8x1xf32> to vector<8x64xf32>
    %65 = arith.mulf %60, %64 : vector<8x64xf32>
    %66 = vector.broadcast %46 : vector<1x64xf32> to vector<8x64xf32>
    %67 = arith.mulf %65, %66 : vector<8x64xf32>
    %68 = vector.broadcast %47 : vector<1x64xf32> to vector<8x64xf32>
    %69 = arith.addf %67, %68 : vector<8x64xf32>
    %70 = arith.subf %69, %24 : vector<8x64xf32>
    %71 = vector.extract_strided_slice %1 {offsets = [6, 0], sizes = [1, 64], strides = [1, 1]} : vector<17x128xf32> to vector<1x64xf32>
    %72 = vector.broadcast %71 : vector<1x64xf32> to vector<8x64xf32>
    %73 = arith.mulf %24, %72 : vector<8x64xf32>
    %cst_28 = arith.constant dense<0.000000e+00> : vector<8xf32>
    %74 = vector.multi_reduction <add>, %73, %cst_28 [1] : vector<8x64xf32> to vector<8xf32>
    %75 = vector.shape_cast %74 : vector<8xf32> to vector<8x1xf32>
    %76 = vector.extract_strided_slice %1 {offsets = [7, 0], sizes = [1, 1], strides = [1, 1]} : vector<17x128xf32> to vector<1x1xf32>
    %77 = vector.broadcast %76 : vector<1x1xf32> to vector<8x1xf32>
    %78 = arith.addf %75, %77 : vector<8x1xf32>
    %cst_29 = arith.constant dense<0xFF800000> : vector<1xf32>
    %79 = vector.multi_reduction <maximumf>, %78, %cst_29 [0] : vector<8x1xf32> to vector<1xf32>
    %80 = vector.shape_cast %79 : vector<1xf32> to vector<1x1xf32>
    %81 = vector.broadcast %80 : vector<1x1xf32> to vector<8x1xf32>
    %82 = arith.subf %78, %81 : vector<8x1xf32>
    %83 = math.exp %82 : vector<8x1xf32>
    %cst_30 = arith.constant dense<0.000000e+00> : vector<1xf32>
    %84 = vector.multi_reduction <add>, %83, %cst_30 [0] : vector<8x1xf32> to vector<1xf32>
    %85 = vector.shape_cast %84 : vector<1xf32> to vector<1x1xf32>
    %86 = vector.broadcast %85 : vector<1x1xf32> to vector<8x1xf32>
    %87 = arith.divf %83, %86 : vector<8x1xf32>
    %88 = vector.broadcast %87 : vector<8x1xf32> to vector<8x64xf32>
    %89 = arith.mulf %88, %24 : vector<8x64xf32>
    %cst_31 = arith.constant dense<0.000000e+00> : vector<64xf32>
    %90 = vector.multi_reduction <add>, %89, %cst_31 [0] : vector<8x64xf32> to vector<64xf32>
    %91 = vector.shape_cast %90 : vector<64xf32> to vector<1x64xf32>
    %92 = vector.broadcast %91 : vector<1x64xf32> to vector<8x64xf32>
    %93 = arith.subf %92, %24 : vector<8x64xf32>
    %c0_32 = arith.constant 0 : index
    %c0_33 = arith.constant 0 : index
    %94 = vector.load %arg13[%c0_32, %c0_33] : memref<8x128xf32, #tpu.memory_space<vmem>>, vector<8x64xf32>
    tpu.vector_store %arg13[%c0_32, %c0_33], %70 {strides = array<i32>} : memref<8x128xf32, #tpu.memory_space<vmem>>, vector<8x64xf32>,
    %c0_34 = arith.constant 0 : index
    %c64 = arith.constant 64 : index
    %95 = vector.load %arg13[%c0_34, %c64] : memref<8x128xf32, #tpu.memory_space<vmem>>, vector<8x64xf32>
    tpu.vector_store %arg13[%c0_34, %c64], %93 {strides = array<i32>} : memref<8x128xf32, #tpu.memory_space<vmem>>, vector<8x64xf32>,
    %c0_35 = arith.constant 0 : index
    %c0_36 = arith.constant 0 : index
    %96 = vector.load %arg13[%c0_35, %c0_36] : memref<8x128xf32, #tpu.memory_space<vmem>>, vector<8x128xf32>
    %97 = arith.truncf %96 : vector<8x128xf32> to vector<8x128xbf16>
    %c0_37 = arith.constant 0 : index
    %c0_38 = arith.constant 0 : index
    %c0_39 = arith.constant 0 : index
    %98 = vector.load %arg7[%c0_37, %c0_38, %c0_39] : memref<2x128x128xbf16, #tpu.memory_space<vmem>>, vector<1x128x128xbf16>
    %99 = vector.shape_cast %98 : vector<1x128x128xbf16> to vector<128x128xbf16>
    %cst_40 = arith.constant dense<0.000000e+00> : vector<8x128xf32>
    %100 = tpu.matmul %97, %99, %cst_40 {dimension_numbers = #tpu.dot_dimension_numbers<[1], [0], [0], [1], [0, 0, 1, 1], [], []>} : vector<8x128xbf16>, vector<128x128xbf16>, vector<8x128xf32> -> vector<8x128xf32>
    %101 = vector.extract_strided_slice %1 {offsets = [8, 0], sizes = [1, 128], strides = [1, 1]} : vector<17x128xf32> to vector<1x128xf32>
    %102 = vector.broadcast %101 : vector<1x128xf32> to vector<8x128xf32>
    %103 = arith.addf %100, %102 : vector<8x128xf32>
    %cst_41 = arith.constant 0.000000e+00 : f32
    %104 = vector.broadcast %cst_41 : f32 to vector<8x128xf32>
    %105 = arith.maximumf %103, %104 : vector<8x128xf32>
    %cst_42 = arith.constant 0.000000e+00 : f32
    %106 = vector.broadcast %cst_42 : f32 to vector<8x128xf32>
    %107 = vector.extract_strided_slice %0 {offsets = [0, 0], sizes = [8, 1], strides = [1, 1]} : vector<8x8xf32> to vector<8x1xf32>
    %cst_43 = arith.constant 0.000000e+00 : f32
    %108 = vector.broadcast %cst_43 : f32 to vector<8x1xf32>
    %109 = arith.cmpf ogt, %107, %108 : vector<8x1xf32>
    %110 = vector.extract_strided_slice %105 {offsets = [0, 0], sizes = [1, 128], strides = [1, 1]} : vector<8x128xf32> to vector<1x128xf32>
    %cst_44 = arith.constant 0.000000e+00 : f32
    %111 = vector.shape_cast %109 : vector<8x1xi1> to vector<8x1xi1>
    %112 = vector.broadcast %111 : vector<8x1xi1> to vector<8x128xi1>
    %113 = vector.shape_cast %110 : vector<1x128xf32> to vector<1x128xf32>
    %114 = vector.broadcast %113 : vector<1x128xf32> to vector<8x128xf32>
    %115 = vector.broadcast %cst_44 : f32 to vector<8x128xf32>
    %116 = arith.select %112, %114, %115 : vector<8x128xi1>, vector<8x128xf32>
    %117 = arith.maximumf %106, %116 : vector<8x128xf32>
    %118 = vector.extract_strided_slice %0 {offsets = [0, 1], sizes = [8, 1], strides = [1, 1]} : vector<8x8xf32> to vector<8x1xf32>
    %cst_45 = arith.constant 0.000000e+00 : f32
    %119 = vector.broadcast %cst_45 : f32 to vector<8x1xf32>
    %120 = arith.cmpf ogt, %118, %119 : vector<8x1xf32>
    %121 = vector.extract_strided_slice %105 {offsets = [1, 0], sizes = [1, 128], strides = [1, 1]} : vector<8x128xf32> to vector<1x128xf32>
    %cst_46 = arith.constant 0.000000e+00 : f32
    %122 = vector.shape_cast %120 : vector<8x1xi1> to vector<8x1xi1>
    %123 = vector.broadcast %122 : vector<8x1xi1> to vector<8x128xi1>
    %124 = vector.shape_cast %121 : vector<1x128xf32> to vector<1x128xf32>
    %125 = vector.broadcast %124 : vector<1x128xf32> to vector<8x128xf32>
    %126 = vector.broadcast %cst_46 : f32 to vector<8x128xf32>
    %127 = arith.select %123, %125, %126 : vector<8x128xi1>, vector<8x128xf32>
    %128 = arith.maximumf %117, %127 : vector<8x128xf32>
    %129 = vector.extract_strided_slice %0 {offsets = [0, 2], sizes = [8, 1], strides = [1, 1]} : vector<8x8xf32> to vector<8x1xf32>
    %cst_47 = arith.constant 0.000000e+00 : f32
    %130 = vector.broadcast %cst_47 : f32 to vector<8x1xf32>
    %131 = arith.cmpf ogt, %129, %130 : vector<8x1xf32>
    %132 = vector.extract_strided_slice %105 {offsets = [2, 0], sizes = [1, 128], strides = [1, 1]} : vector<8x128xf32> to vector<1x128xf32>
    %cst_48 = arith.constant 0.000000e+00 : f32
    %133 = vector.shape_cast %131 : vector<8x1xi1> to vector<8x1xi1>
    %134 = vector.broadcast %133 : vector<8x1xi1> to vector<8x128xi1>
    %135 = vector.shape_cast %132 : vector<1x128xf32> to vector<1x128xf32>
    %136 = vector.broadcast %135 : vector<1x128xf32> to vector<8x128xf32>
    %137 = vector.broadcast %cst_48 : f32 to vector<8x128xf32>
    %138 = arith.select %134, %136, %137 : vector<8x128xi1>, vector<8x128xf32>
    %139 = arith.maximumf %128, %138 : vector<8x128xf32>
    %140 = vector.extract_strided_slice %0 {offsets = [0, 3], sizes = [8, 1], strides = [1, 1]} : vector<8x8xf32> to vector<8x1xf32>
    %cst_49 = arith.constant 0.000000e+00 : f32
    %141 = vector.broadcast %cst_49 : f32 to vector<8x1xf32>
    %142 = arith.cmpf ogt, %140, %141 : vector<8x1xf32>
    %143 = vector.extract_strided_slice %105 {offsets = [3, 0], sizes = [1, 128], strides = [1, 1]} : vector<8x128xf32> to vector<1x128xf32>
    %cst_50 = arith.constant 0.000000e+00 : f32
    %144 = vector.shape_cast %142 : vector<8x1xi1> to vector<8x1xi1>
    %145 = vector.broadcast %144 : vector<8x1xi1> to vector<8x128xi1>
    %146 = vector.shape_cast %143 : vector<1x128xf32> to vector<1x128xf32>
    %147 = vector.broadcast %146 : vector<1x128xf32> to vector<8x128xf32>
    %148 = vector.broadcast %cst_50 : f32 to vector<8x128xf32>
    %149 = arith.select %145, %147, %148 : vector<8x128xi1>, vector<8x128xf32>
    %150 = arith.maximumf %139, %149 : vector<8x128xf32>
    %151 = vector.extract_strided_slice %0 {offsets = [0, 4], sizes = [8, 1], strides = [1, 1]} : vector<8x8xf32> to vector<8x1xf32>
    %cst_51 = arith.constant 0.000000e+00 : f32
    %152 = vector.broadcast %cst_51 : f32 to vector<8x1xf32>
    %153 = arith.cmpf ogt, %151, %152 : vector<8x1xf32>
    %154 = vector.extract_strided_slice %105 {offsets = [4, 0], sizes = [1, 128], strides = [1, 1]} : vector<8x128xf32> to vector<1x128xf32>
    %cst_52 = arith.constant 0.000000e+00 : f32
    %155 = vector.shape_cast %153 : vector<8x1xi1> to vector<8x1xi1>
    %156 = vector.broadcast %155 : vector<8x1xi1> to vector<8x128xi1>
    %157 = vector.shape_cast %154 : vector<1x128xf32> to vector<1x128xf32>
    %158 = vector.broadcast %157 : vector<1x128xf32> to vector<8x128xf32>
    %159 = vector.broadcast %cst_52 : f32 to vector<8x128xf32>
    %160 = arith.select %156, %158, %159 : vector<8x128xi1>, vector<8x128xf32>
    %161 = arith.maximumf %150, %160 : vector<8x128xf32>
    %162 = vector.extract_strided_slice %0 {offsets = [0, 5], sizes = [8, 1], strides = [1, 1]} : vector<8x8xf32> to vector<8x1xf32>
    %cst_53 = arith.constant 0.000000e+00 : f32
    %163 = vector.broadcast %cst_53 : f32 to vector<8x1xf32>
    %164 = arith.cmpf ogt, %162, %163 : vector<8x1xf32>
    %165 = vector.extract_strided_slice %105 {offsets = [5, 0], sizes = [1, 128], strides = [1, 1]} : vector<8x128xf32> to vector<1x128xf32>
    %cst_54 = arith.constant 0.000000e+00 : f32
    %166 = vector.shape_cast %164 : vector<8x1xi1> to vector<8x1xi1>
    %167 = vector.broadcast %166 : vector<8x1xi1> to vector<8x128xi1>
    %168 = vector.shape_cast %165 : vector<1x128xf32> to vector<1x128xf32>
    %169 = vector.broadcast %168 : vector<1x128xf32> to vector<8x128xf32>
    %170 = vector.broadcast %cst_54 : f32 to vector<8x128xf32>
    %171 = arith.select %167, %169, %170 : vector<8x128xi1>, vector<8x128xf32>
    %172 = arith.maximumf %161, %171 : vector<8x128xf32>
    %173 = vector.extract_strided_slice %0 {offsets = [0, 6], sizes = [8, 1], strides = [1, 1]} : vector<8x8xf32> to vector<8x1xf32>
    %cst_55 = arith.constant 0.000000e+00 : f32
    %174 = vector.broadcast %cst_55 : f32 to vector<8x1xf32>
    %175 = arith.cmpf ogt, %173, %174 : vector<8x1xf32>
    %176 = vector.extract_strided_slice %105 {offsets = [6, 0], sizes = [1, 128], strides = [1, 1]} : vector<8x128xf32> to vector<1x128xf32>
    %cst_56 = arith.constant 0.000000e+00 : f32
    %177 = vector.shape_cast %175 : vector<8x1xi1> to vector<8x1xi1>
    %178 = vector.broadcast %177 : vector<8x1xi1> to vector<8x128xi1>
    %179 = vector.shape_cast %176 : vector<1x128xf32> to vector<1x128xf32>
    %180 = vector.broadcast %179 : vector<1x128xf32> to vector<8x128xf32>
    %181 = vector.broadcast %cst_56 : f32 to vector<8x128xf32>
    %182 = arith.select %178, %180, %181 : vector<8x128xi1>, vector<8x128xf32>
    %183 = arith.maximumf %172, %182 : vector<8x128xf32>
    %184 = vector.extract_strided_slice %0 {offsets = [0, 7], sizes = [8, 1], strides = [1, 1]} : vector<8x8xf32> to vector<8x1xf32>
    %cst_57 = arith.constant 0.000000e+00 : f32
    %185 = vector.broadcast %cst_57 : f32 to vector<8x1xf32>
    %186 = arith.cmpf ogt, %184, %185 : vector<8x1xf32>
    %187 = vector.extract_strided_slice %105 {offsets = [7, 0], sizes = [1, 128], strides = [1, 1]} : vector<8x128xf32> to vector<1x128xf32>
    %cst_58 = arith.constant 0.000000e+00 : f32
    %188 = vector.shape_cast %186 : vector<8x1xi1> to vector<8x1xi1>
    %189 = vector.broadcast %188 : vector<8x1xi1> to vector<8x128xi1>
    %190 = vector.shape_cast %187 : vector<1x128xf32> to vector<1x128xf32>
    %191 = vector.broadcast %190 : vector<1x128xf32> to vector<8x128xf32>
    %192 = vector.broadcast %cst_58 : f32 to vector<8x128xf32>
    %193 = arith.select %189, %191, %192 : vector<8x128xi1>, vector<8x128xf32>
    %194 = arith.maximumf %183, %193 : vector<8x128xf32>
    %195 = arith.truncf %96 : vector<8x128xf32> to vector<8x128xbf16>
    %c0_59 = arith.constant 0 : index
    %c0_60 = arith.constant 0 : index
    %c0_61 = arith.constant 0 : index
    %196 = vector.load %arg8[%c0_59, %c0_60, %c0_61] : memref<2x128x128xbf16, #tpu.memory_space<vmem>>, vector<1x128x128xbf16>
    %197 = vector.shape_cast %196 : vector<1x128x128xbf16> to vector<128x128xbf16>
    %cst_62 = arith.constant dense<0.000000e+00> : vector<8x128xf32>
    %198 = tpu.matmul %195, %197, %cst_62 {dimension_numbers = #tpu.dot_dimension_numbers<[1], [0], [0], [1], [0, 0, 1, 1], [], []>} : vector<8x128xbf16>, vector<128x128xbf16>, vector<8x128xf32> -> vector<8x128xf32>
    %199 = arith.truncf %194 : vector<8x128xf32> to vector<8x128xbf16>
    %c0_63 = arith.constant 0 : index
    %c0_64 = arith.constant 0 : index
    %c0_65 = arith.constant 0 : index
    %200 = vector.load %arg9[%c0_63, %c0_64, %c0_65] : memref<2x128x128xbf16, #tpu.memory_space<vmem>>, vector<1x128x128xbf16>
    %201 = vector.shape_cast %200 : vector<1x128x128xbf16> to vector<128x128xbf16>
    %cst_66 = arith.constant dense<0.000000e+00> : vector<8x128xf32>
    %202 = tpu.matmul %199, %201, %cst_66 {dimension_numbers = #tpu.dot_dimension_numbers<[1], [0], [0], [1], [0, 0, 1, 1], [], []>} : vector<8x128xbf16>, vector<128x128xbf16>, vector<8x128xf32> -> vector<8x128xf32>
    %203 = arith.addf %198, %202 : vector<8x128xf32>
    %204 = vector.extract_strided_slice %1 {offsets = [9, 0], sizes = [1, 128], strides = [1, 1]} : vector<17x128xf32> to vector<1x128xf32>
    %205 = vector.broadcast %204 : vector<1x128xf32> to vector<8x128xf32>
    %206 = arith.addf %203, %205 : vector<8x128xf32>
    %207 = arith.addf %206, %96 : vector<8x128xf32>
    %208 = vector.extract_strided_slice %1 {offsets = [10, 0], sizes = [1, 128], strides = [1, 1]} : vector<17x128xf32> to vector<1x128xf32>
    %209 = vector.extract_strided_slice %1 {offsets = [11, 0], sizes = [1, 128], strides = [1, 1]} : vector<17x128xf32> to vector<1x128xf32>
    %cst_67 = arith.constant dense<0.000000e+00> : vector<8xf32>
    %210 = vector.multi_reduction <add>, %207, %cst_67 [1] : vector<8x128xf32> to vector<8xf32>
    %211 = vector.shape_cast %210 : vector<8xf32> to vector<8x1xf32>
    %cst_68 = arith.constant 1.280000e+02 : f32
    %212 = vector.broadcast %cst_68 : f32 to vector<8x1xf32>
    %213 = arith.divf %211, %212 : vector<8x1xf32>
    %214 = vector.broadcast %213 : vector<8x1xf32> to vector<8x128xf32>
    %215 = arith.subf %207, %214 : vector<8x128xf32>
    %216 = arith.mulf %215, %215 : vector<8x128xf32>
    %cst_69 = arith.constant dense<0.000000e+00> : vector<8xf32>
    %217 = vector.multi_reduction <add>, %216, %cst_69 [1] : vector<8x128xf32> to vector<8xf32>
    %218 = vector.shape_cast %217 : vector<8xf32> to vector<8x1xf32>
    %cst_70 = arith.constant 1.280000e+02 : f32
    %219 = vector.broadcast %cst_70 : f32 to vector<8x1xf32>
    %220 = arith.divf %218, %219 : vector<8x1xf32>
    %221 = vector.broadcast %213 : vector<8x1xf32> to vector<8x128xf32>
    %222 = arith.subf %207, %221 : vector<8x128xf32>
    %cst_71 = arith.constant 9.99999974E-6 : f32
    %223 = vector.broadcast %cst_71 : f32 to vector<8x1xf32>
    %224 = arith.addf %220, %223 : vector<8x1xf32>
    %225 = math.rsqrt %224 : vector<8x1xf32>
    %226 = vector.broadcast %225 : vector<8x1xf32> to vector<8x128xf32>
    %227 = arith.mulf %222, %226 : vector<8x128xf32>
    %228 = vector.broadcast %208 : vector<1x128xf32> to vector<8x128xf32>
    %229 = arith.mulf %227, %228 : vector<8x128xf32>
    %230 = vector.broadcast %209 : vector<1x128xf32> to vector<8x128xf32>
    %231 = arith.addf %229, %230 : vector<8x128xf32>
    %cst_72 = arith.constant 0.000000e+00 : f32
    %232 = vector.broadcast %cst_72 : f32 to vector<8x128xf32>
    %233 = arith.maximumf %231, %232 : vector<8x128xf32>
    %234 = arith.truncf %233 : vector<8x128xf32> to vector<8x128xbf16>
    %c1 = arith.constant 1 : index
    %c0_73 = arith.constant 0 : index
    %c0_74 = arith.constant 0 : index
    %235 = vector.load %arg7[%c1, %c0_73, %c0_74] : memref<2x128x128xbf16, #tpu.memory_space<vmem>>, vector<1x128x128xbf16>
    %236 = vector.shape_cast %235 : vector<1x128x128xbf16> to vector<128x128xbf16>
    %cst_75 = arith.constant dense<0.000000e+00> : vector<8x128xf32>
    %237 = tpu.matmul %234, %236, %cst_75 {dimension_numbers = #tpu.dot_dimension_numbers<[1], [0], [0], [1], [0, 0, 1, 1], [], []>} : vector<8x128xbf16>, vector<128x128xbf16>, vector<8x128xf32> -> vector<8x128xf32>
    %238 = vector.extract_strided_slice %1 {offsets = [12, 0], sizes = [1, 128], strides = [1, 1]} : vector<17x128xf32> to vector<1x128xf32>
    %239 = vector.broadcast %238 : vector<1x128xf32> to vector<8x128xf32>
    %240 = arith.addf %237, %239 : vector<8x128xf32>
    %cst_76 = arith.constant 0.000000e+00 : f32
    %241 = vector.broadcast %cst_76 : f32 to vector<8x128xf32>
    %242 = arith.maximumf %240, %241 : vector<8x128xf32>
    %cst_77 = arith.constant 0.000000e+00 : f32
    %243 = vector.broadcast %cst_77 : f32 to vector<8x128xf32>
    %244 = vector.extract_strided_slice %0 {offsets = [0, 0], sizes = [8, 1], strides = [1, 1]} : vector<8x8xf32> to vector<8x1xf32>
    %cst_78 = arith.constant 0.000000e+00 : f32
    %245 = vector.broadcast %cst_78 : f32 to vector<8x1xf32>
    %246 = arith.cmpf ogt, %244, %245 : vector<8x1xf32>
    %247 = vector.extract_strided_slice %242 {offsets = [0, 0], sizes = [1, 128], strides = [1, 1]} : vector<8x128xf32> to vector<1x128xf32>
    %cst_79 = arith.constant 0.000000e+00 : f32
    %248 = vector.shape_cast %246 : vector<8x1xi1> to vector<8x1xi1>
    %249 = vector.broadcast %248 : vector<8x1xi1> to vector<8x128xi1>
    %250 = vector.shape_cast %247 : vector<1x128xf32> to vector<1x128xf32>
    %251 = vector.broadcast %250 : vector<1x128xf32> to vector<8x128xf32>
    %252 = vector.broadcast %cst_79 : f32 to vector<8x128xf32>
    %253 = arith.select %249, %251, %252 : vector<8x128xi1>, vector<8x128xf32>
    %254 = arith.maximumf %243, %253 : vector<8x128xf32>
    %255 = vector.extract_strided_slice %0 {offsets = [0, 1], sizes = [8, 1], strides = [1, 1]} : vector<8x8xf32> to vector<8x1xf32>
    %cst_80 = arith.constant 0.000000e+00 : f32
    %256 = vector.broadcast %cst_80 : f32 to vector<8x1xf32>
    %257 = arith.cmpf ogt, %255, %256 : vector<8x1xf32>
    %258 = vector.extract_strided_slice %242 {offsets = [1, 0], sizes = [1, 128], strides = [1, 1]} : vector<8x128xf32> to vector<1x128xf32>
    %cst_81 = arith.constant 0.000000e+00 : f32
    %259 = vector.shape_cast %257 : vector<8x1xi1> to vector<8x1xi1>
    %260 = vector.broadcast %259 : vector<8x1xi1> to vector<8x128xi1>
    %261 = vector.shape_cast %258 : vector<1x128xf32> to vector<1x128xf32>
    %262 = vector.broadcast %261 : vector<1x128xf32> to vector<8x128xf32>
    %263 = vector.broadcast %cst_81 : f32 to vector<8x128xf32>
    %264 = arith.select %260, %262, %263 : vector<8x128xi1>, vector<8x128xf32>
    %265 = arith.maximumf %254, %264 : vector<8x128xf32>
    %266 = vector.extract_strided_slice %0 {offsets = [0, 2], sizes = [8, 1], strides = [1, 1]} : vector<8x8xf32> to vector<8x1xf32>
    %cst_82 = arith.constant 0.000000e+00 : f32
    %267 = vector.broadcast %cst_82 : f32 to vector<8x1xf32>
    %268 = arith.cmpf ogt, %266, %267 : vector<8x1xf32>
    %269 = vector.extract_strided_slice %242 {offsets = [2, 0], sizes = [1, 128], strides = [1, 1]} : vector<8x128xf32> to vector<1x128xf32>
    %cst_83 = arith.constant 0.000000e+00 : f32
    %270 = vector.shape_cast %268 : vector<8x1xi1> to vector<8x1xi1>
    %271 = vector.broadcast %270 : vector<8x1xi1> to vector<8x128xi1>
    %272 = vector.shape_cast %269 : vector<1x128xf32> to vector<1x128xf32>
    %273 = vector.broadcast %272 : vector<1x128xf32> to vector<8x128xf32>
    %274 = vector.broadcast %cst_83 : f32 to vector<8x128xf32>
    %275 = arith.select %271, %273, %274 : vector<8x128xi1>, vector<8x128xf32>
    %276 = arith.maximumf %265, %275 : vector<8x128xf32>
    %277 = vector.extract_strided_slice %0 {offsets = [0, 3], sizes = [8, 1], strides = [1, 1]} : vector<8x8xf32> to vector<8x1xf32>
    %cst_84 = arith.constant 0.000000e+00 : f32
    %278 = vector.broadcast %cst_84 : f32 to vector<8x1xf32>
    %279 = arith.cmpf ogt, %277, %278 : vector<8x1xf32>
    %280 = vector.extract_strided_slice %242 {offsets = [3, 0], sizes = [1, 128], strides = [1, 1]} : vector<8x128xf32> to vector<1x128xf32>
    %cst_85 = arith.constant 0.000000e+00 : f32
    %281 = vector.shape_cast %279 : vector<8x1xi1> to vector<8x1xi1>
    %282 = vector.broadcast %281 : vector<8x1xi1> to vector<8x128xi1>
    %283 = vector.shape_cast %280 : vector<1x128xf32> to vector<1x128xf32>
    %284 = vector.broadcast %283 : vector<1x128xf32> to vector<8x128xf32>
    %285 = vector.broadcast %cst_85 : f32 to vector<8x128xf32>
    %286 = arith.select %282, %284, %285 : vector<8x128xi1>, vector<8x128xf32>
    %287 = arith.maximumf %276, %286 : vector<8x128xf32>
    %288 = vector.extract_strided_slice %0 {offsets = [0, 4], sizes = [8, 1], strides = [1, 1]} : vector<8x8xf32> to vector<8x1xf32>
    %cst_86 = arith.constant 0.000000e+00 : f32
    %289 = vector.broadcast %cst_86 : f32 to vector<8x1xf32>
    %290 = arith.cmpf ogt, %288, %289 : vector<8x1xf32>
    %291 = vector.extract_strided_slice %242 {offsets = [4, 0], sizes = [1, 128], strides = [1, 1]} : vector<8x128xf32> to vector<1x128xf32>
    %cst_87 = arith.constant 0.000000e+00 : f32
    %292 = vector.shape_cast %290 : vector<8x1xi1> to vector<8x1xi1>
    %293 = vector.broadcast %292 : vector<8x1xi1> to vector<8x128xi1>
    %294 = vector.shape_cast %291 : vector<1x128xf32> to vector<1x128xf32>
    %295 = vector.broadcast %294 : vector<1x128xf32> to vector<8x128xf32>
    %296 = vector.broadcast %cst_87 : f32 to vector<8x128xf32>
    %297 = arith.select %293, %295, %296 : vector<8x128xi1>, vector<8x128xf32>
    %298 = arith.maximumf %287, %297 : vector<8x128xf32>
    %299 = vector.extract_strided_slice %0 {offsets = [0, 5], sizes = [8, 1], strides = [1, 1]} : vector<8x8xf32> to vector<8x1xf32>
    %cst_88 = arith.constant 0.000000e+00 : f32
    %300 = vector.broadcast %cst_88 : f32 to vector<8x1xf32>
    %301 = arith.cmpf ogt, %299, %300 : vector<8x1xf32>
    %302 = vector.extract_strided_slice %242 {offsets = [5, 0], sizes = [1, 128], strides = [1, 1]} : vector<8x128xf32> to vector<1x128xf32>
    %cst_89 = arith.constant 0.000000e+00 : f32
    %303 = vector.shape_cast %301 : vector<8x1xi1> to vector<8x1xi1>
    %304 = vector.broadcast %303 : vector<8x1xi1> to vector<8x128xi1>
    %305 = vector.shape_cast %302 : vector<1x128xf32> to vector<1x128xf32>
    %306 = vector.broadcast %305 : vector<1x128xf32> to vector<8x128xf32>
    %307 = vector.broadcast %cst_89 : f32 to vector<8x128xf32>
    %308 = arith.select %304, %306, %307 : vector<8x128xi1>, vector<8x128xf32>
    %309 = arith.maximumf %298, %308 : vector<8x128xf32>
    %310 = vector.extract_strided_slice %0 {offsets = [0, 6], sizes = [8, 1], strides = [1, 1]} : vector<8x8xf32> to vector<8x1xf32>
    %cst_90 = arith.constant 0.000000e+00 : f32
    %311 = vector.broadcast %cst_90 : f32 to vector<8x1xf32>
    %312 = arith.cmpf ogt, %310, %311 : vector<8x1xf32>
    %313 = vector.extract_strided_slice %242 {offsets = [6, 0], sizes = [1, 128], strides = [1, 1]} : vector<8x128xf32> to vector<1x128xf32>
    %cst_91 = arith.constant 0.000000e+00 : f32
    %314 = vector.shape_cast %312 : vector<8x1xi1> to vector<8x1xi1>
    %315 = vector.broadcast %314 : vector<8x1xi1> to vector<8x128xi1>
    %316 = vector.shape_cast %313 : vector<1x128xf32> to vector<1x128xf32>
    %317 = vector.broadcast %316 : vector<1x128xf32> to vector<8x128xf32>
    %318 = vector.broadcast %cst_91 : f32 to vector<8x128xf32>
    %319 = arith.select %315, %317, %318 : vector<8x128xi1>, vector<8x128xf32>
    %320 = arith.maximumf %309, %319 : vector<8x128xf32>
    %321 = vector.extract_strided_slice %0 {offsets = [0, 7], sizes = [8, 1], strides = [1, 1]} : vector<8x8xf32> to vector<8x1xf32>
    %cst_92 = arith.constant 0.000000e+00 : f32
    %322 = vector.broadcast %cst_92 : f32 to vector<8x1xf32>
    %323 = arith.cmpf ogt, %321, %322 : vector<8x1xf32>
    %324 = vector.extract_strided_slice %242 {offsets = [7, 0], sizes = [1, 128], strides = [1, 1]} : vector<8x128xf32> to vector<1x128xf32>
    %cst_93 = arith.constant 0.000000e+00 : f32
    %325 = vector.shape_cast %323 : vector<8x1xi1> to vector<8x1xi1>
    %326 = vector.broadcast %325 : vector<8x1xi1> to vector<8x128xi1>
    %327 = vector.shape_cast %324 : vector<1x128xf32> to vector<1x128xf32>
    %328 = vector.broadcast %327 : vector<1x128xf32> to vector<8x128xf32>
    %329 = vector.broadcast %cst_93 : f32 to vector<8x128xf32>
    %330 = arith.select %326, %328, %329 : vector<8x128xi1>, vector<8x128xf32>
    %331 = arith.maximumf %320, %330 : vector<8x128xf32>
    %332 = arith.truncf %233 : vector<8x128xf32> to vector<8x128xbf16>
    %c1_94 = arith.constant 1 : index
    %c0_95 = arith.constant 0 : index
    %c0_96 = arith.constant 0 : index
    %333 = vector.load %arg8[%c1_94, %c0_95, %c0_96] : memref<2x128x128xbf16, #tpu.memory_space<vmem>>, vector<1x128x128xbf16>
    %334 = vector.shape_cast %333 : vector<1x128x128xbf16> to vector<128x128xbf16>
    %cst_97 = arith.constant dense<0.000000e+00> : vector<8x128xf32>
    %335 = tpu.matmul %332, %334, %cst_97 {dimension_numbers = #tpu.dot_dimension_numbers<[1], [0], [0], [1], [0, 0, 1, 1], [], []>} : vector<8x128xbf16>, vector<128x128xbf16>, vector<8x128xf32> -> vector<8x128xf32>
    %336 = arith.truncf %331 : vector<8x128xf32> to vector<8x128xbf16>
    %c1_98 = arith.constant 1 : index
    %c0_99 = arith.constant 0 : index
    %c0_100 = arith.constant 0 : index
    %337 = vector.load %arg9[%c1_98, %c0_99, %c0_100] : memref<2x128x128xbf16, #tpu.memory_space<vmem>>, vector<1x128x128xbf16>
    %338 = vector.shape_cast %337 : vector<1x128x128xbf16> to vector<128x128xbf16>
    %cst_101 = arith.constant dense<0.000000e+00> : vector<8x128xf32>
    %339 = tpu.matmul %336, %338, %cst_101 {dimension_numbers = #tpu.dot_dimension_numbers<[1], [0], [0], [1], [0, 0, 1, 1], [], []>} : vector<8x128xbf16>, vector<128x128xbf16>, vector<8x128xf32> -> vector<8x128xf32>
    %340 = arith.addf %335, %339 : vector<8x128xf32>
    %341 = vector.extract_strided_slice %1 {offsets = [13, 0], sizes = [1, 128], strides = [1, 1]} : vector<17x128xf32> to vector<1x128xf32>
    %342 = vector.broadcast %341 : vector<1x128xf32> to vector<8x128xf32>
    %343 = arith.addf %340, %342 : vector<8x128xf32>
    %344 = arith.addf %343, %233 : vector<8x128xf32>
    %345 = vector.extract_strided_slice %1 {offsets = [14, 0], sizes = [1, 128], strides = [1, 1]} : vector<17x128xf32> to vector<1x128xf32>
    %346 = vector.extract_strided_slice %1 {offsets = [15, 0], sizes = [1, 128], strides = [1, 1]} : vector<17x128xf32> to vector<1x128xf32>
    %cst_102 = arith.constant dense<0.000000e+00> : vector<8xf32>
    %347 = vector.multi_reduction <add>, %344, %cst_102 [1] : vector<8x128xf32> to vector<8xf32>
    %348 = vector.shape_cast %347 : vector<8xf32> to vector<8x1xf32>
    %cst_103 = arith.constant 1.280000e+02 : f32
    %349 = vector.broadcast %cst_103 : f32 to vector<8x1xf32>
    %350 = arith.divf %348, %349 : vector<8x1xf32>
    %351 = vector.broadcast %350 : vector<8x1xf32> to vector<8x128xf32>
    %352 = arith.subf %344, %351 : vector<8x128xf32>
    %353 = arith.mulf %352, %352 : vector<8x128xf32>
    %cst_104 = arith.constant dense<0.000000e+00> : vector<8xf32>
    %354 = vector.multi_reduction <add>, %353, %cst_104 [1] : vector<8x128xf32> to vector<8xf32>
    %355 = vector.shape_cast %354 : vector<8xf32> to vector<8x1xf32>
    %cst_105 = arith.constant 1.280000e+02 : f32
    %356 = vector.broadcast %cst_105 : f32 to vector<8x1xf32>
    %357 = arith.divf %355, %356 : vector<8x1xf32>
    %358 = vector.broadcast %350 : vector<8x1xf32> to vector<8x128xf32>
    %359 = arith.subf %344, %358 : vector<8x128xf32>
    %cst_106 = arith.constant 9.99999974E-6 : f32
    %360 = vector.broadcast %cst_106 : f32 to vector<8x1xf32>
    %361 = arith.addf %357, %360 : vector<8x1xf32>
    %362 = math.rsqrt %361 : vector<8x1xf32>
    %363 = vector.broadcast %362 : vector<8x1xf32> to vector<8x128xf32>
    %364 = arith.mulf %359, %363 : vector<8x128xf32>
    %365 = vector.broadcast %345 : vector<1x128xf32> to vector<8x128xf32>
    %366 = arith.mulf %364, %365 : vector<8x128xf32>
    %367 = vector.broadcast %346 : vector<1x128xf32> to vector<8x128xf32>
    %368 = arith.addf %366, %367 : vector<8x128xf32>
    %c0_107 = arith.constant 0 : index
    %c0_108 = arith.constant 0 : index
    %369 = vector.load %arg10[%c0_107, %c0_108] : memref<128x4xf32, #tpu.memory_space<vmem>>, vector<128x4xf32>
    %cst_109 = arith.constant dense<0.000000e+00> : vector<8x4xf32>
    %370 = tpu.matmul %368, %369, %cst_109 {dimension_numbers = #tpu.dot_dimension_numbers<[1], [0], [0], [1], [0, 0, 1, 1], [], []>} : vector<8x128xf32>, vector<128x4xf32>, vector<8x4xf32> -> vector<8x4xf32>
    %371 = vector.extract_strided_slice %1 {offsets = [16, 0], sizes = [1, 4], strides = [1, 1]} : vector<17x128xf32> to vector<1x4xf32>
    %372 = vector.broadcast %371 : vector<1x4xf32> to vector<8x4xf32>
    %373 = arith.addf %370, %372 : vector<8x4xf32>
    %c0_110 = arith.constant 0 : index
    %c0_111 = arith.constant 0 : index
    %374 = vector.load %arg12[%c0_110, %c0_111] : memref<8x4xf32, #tpu.memory_space<vmem>>, vector<8x4xf32>
    tpu.vector_store %arg12[%c0_110, %c0_111], %373 {strides = array<i32>} : memref<8x4xf32, #tpu.memory_space<vmem>>, vector<8x4xf32>,
    return
  }
  func.func @transform_0(%arg0: i32) -> (i32, i32) {
    %c0_i32 = arith.constant 0 : i32
    %c0_i32_0 = arith.constant 0 : i32
    %c0_i32_1 = arith.constant 0 : i32
    return %c0_i32, %c0_i32_0 : i32, i32
  }
  func.func @transform_1(%arg0: i32) -> (i32, i32) {
    %c0_i32 = arith.constant 0 : i32
    %c0_i32_0 = arith.constant 0 : i32
    %c0_i32_1 = arith.constant 0 : i32
    return %c0_i32, %c0_i32_0 : i32, i32
  }
  func.func @transform_2(%arg0: i32) -> (i32, i32) {
    %c0_i32 = arith.constant 0 : i32
    %c0_i32_0 = arith.constant 0 : i32
    %c0_i32_1 = arith.constant 0 : i32
    return %c0_i32, %c0_i32_0 : i32, i32
  }
  func.func @transform_3(%arg0: i32) -> (i32, i32) {
    %c0_i32 = arith.constant 0 : i32
    %c0_i32_0 = arith.constant 0 : i32
    %c0_i32_1 = arith.constant 0 : i32
    return %c0_i32, %c0_i32_0 : i32, i32
  }
  func.func @transform_4(%arg0: i32) -> (i32, i32) {
    %c0_i32 = arith.constant 0 : i32
    %c0_i32_0 = arith.constant 0 : i32
    %c0_i32_1 = arith.constant 0 : i32
    return %c0_i32, %c0_i32_0 : i32, i32
  }
  func.func @transform_5(%arg0: i32) -> (i32, i32) {
    %c0_i32 = arith.constant 0 : i32
    %c0_i32_0 = arith.constant 0 : i32
    %c0_i32_1 = arith.constant 0 : i32
    return %c0_i32, %c0_i32_0 : i32, i32
  }
  func.func @transform_6(%arg0: i32) -> (i32, i32, i32) {
    %c0_i32 = arith.constant 0 : i32
    %c0_i32_0 = arith.constant 0 : i32
    %c0_i32_1 = arith.constant 0 : i32
    %c0_i32_2 = arith.constant 0 : i32
    return %c0_i32, %c0_i32_0, %c0_i32_1 : i32, i32, i32
  }
  func.func @transform_7(%arg0: i32) -> (i32, i32, i32) {
    %c0_i32 = arith.constant 0 : i32
    %c0_i32_0 = arith.constant 0 : i32
    %c0_i32_1 = arith.constant 0 : i32
    %c0_i32_2 = arith.constant 0 : i32
    return %c0_i32, %c0_i32_0, %c0_i32_1 : i32, i32, i32
  }
  func.func @transform_8(%arg0: i32) -> (i32, i32, i32) {
    %c0_i32 = arith.constant 0 : i32
    %c0_i32_0 = arith.constant 0 : i32
    %c0_i32_1 = arith.constant 0 : i32
    %c0_i32_2 = arith.constant 0 : i32
    return %c0_i32, %c0_i32_0, %c0_i32_1 : i32, i32, i32
  }
  func.func @transform_9(%arg0: i32) -> (i32, i32) {
    %c0_i32 = arith.constant 0 : i32
    %c0_i32_0 = arith.constant 0 : i32
    %c0_i32_1 = arith.constant 0 : i32
    return %c0_i32, %c0_i32_0 : i32, i32
  }
  func.func @transform_10(%arg0: i32) -> (i32, i32) {
    %c0_i32 = arith.constant 0 : i32
    %c0_i32_0 = arith.constant 0 : i32
    %c0_i32_1 = arith.constant 0 : i32
    return %c0_i32, %c0_i32_0 : i32, i32
  }
  func.func @transform_11(%arg0: i32) -> (i32, i32) {
    %c0_i32 = arith.constant 0 : i32
    %c0_i32_0 = arith.constant 0 : i32
    %c0_i32_1 = arith.constant 0 : i32
    return %c0_i32, %c0_i32_0 : i32, i32
  }
  func.func @transform_12(%arg0: i32) -> (i32, i32) {
    %c0_i32 = arith.constant 0 : i32
    %c0_i32_0 = arith.constant 0 : i32
    %c0_i32_1 = arith.constant 0 : i32
    return %c0_i32, %c0_i32_0 : i32, i32
  }
}

</mosaic_0001>

<llo_original>
// kernel: tpu_custom_call.1
$region0: #{tpu_custom_call.1}
  #allocation0 [shape = 'u32[]', space=smem, size = 0x4, offset = 0x4, fixed_abs, tag = 'smem constant byte address 0x4 - core index']
  #allocation1 [shape = 'u32[144,128]{1,0:T(1,128)}', space=vmem, size = 0x12000, scoped, tag = 'internal scratch']
  %s0 = inlined_call_operand.vmem [shape: f32[8,8], index: 0, kind: input, shape index: {}]
  %s1 = inlined_call_operand.hbm [shape: f32[8,10], index: 1, kind: input, shape index: {}]
  %s2 = inlined_call_operand.hbm [shape: f32[10,64], index: 2, kind: input, shape index: {}]
  %s3 = inlined_call_operand.hbm [shape: bf16[64,64], index: 3, kind: input, shape index: {}]
  %s4 = inlined_call_operand.hbm [shape: bf16[64,64], index: 4, kind: input, shape index: {}]
  %s5 = inlined_call_operand.hbm [shape: bf16[64,64], index: 5, kind: input, shape index: {}]
  %s6 = inlined_call_operand.vmem [shape: bf16[2,128,128], index: 6, kind: input, shape index: {}]
  %s7 = inlined_call_operand.hbm [shape: bf16[2,128,128], index: 7, kind: input, shape index: {}]
  %s8 = inlined_call_operand.hbm [shape: bf16[2,128,128], index: 8, kind: input, shape index: {}]
  %s9 = inlined_call_operand.vmem [shape: f32[128,4], index: 9, kind: input, shape index: {}]
  %s10 = inlined_call_operand.hbm [shape: f32[17,128], index: 10, kind: input, shape index: {}]
  %s11 = inlined_call_operand.vmem [shape: f32[8,4], index: 11, kind: output, shape index: {0}]
  %s12 = inlined_call_operand.hbm [shape: f32[8,128], index: 12, kind: output, shape index: {1}]
  %13 = xla_tuple %s11, %s12
  %s14 = sld [smem:[#allocation0]]
  $region94: #{tpu_custom_call.1} parent=0
    _
  %s16 = ssub.s32 1, %s14
  %s17 = scalar_select 0, %s16, %s14
  $region1: #{tpu_custom_call.1} parent=0
    #allocation2 [shape = 'u8[4096]{0}', space=vmem, size = 0x1000, scoped, tag = 'input window, operand 1, single buffered']
    #allocation3 [shape = 's32[1]{0}', space=sflag, size = 0x4, scoped, tag = 'scoped memory for tpu_custom_call.1']
    #allocation4 [shape = 's32[1]{0}', space=sflag, size = 0x4, scoped, tag = 'scoped memory for tpu_custom_call.1']
    #allocation5 [shape = 'u8[8192]{0}', space=vmem, size = 0x2000, scoped, tag = 'input window, operand 2, single buffered']
    #allocation6 [shape = 's32[1]{0}', space=sflag, size = 0x4, scoped, tag = 'scoped memory for tpu_custom_call.1']
    #allocation7 [shape = 'u8[16384]{0}', space=vmem, size = 0x4000, scoped, tag = 'input window, operand 3, single buffered']
    #allocation8 [shape = 'u8[16384]{0}', space=vmem, size = 0x4000, scoped, tag = 'input window, operand 4, single buffered']
    #allocation9 [shape = 's32[1]{0}', space=sflag, size = 0x4, scoped, tag = 'scoped memory for tpu_custom_call.1']
    #allocation10 [shape = 'u8[16384]{0}', space=vmem, size = 0x4000, scoped, tag = 'input window, operand 5, single buffered']
    #allocation11 [shape = 'u8[65536]{0}', space=vmem, size = 0x10000, scoped, tag = 'input window, operand 7, single buffered']
    #allocation12 [shape = 's32[1]{0}', space=sflag, size = 0x4, scoped, tag = 'scoped memory for tpu_custom_call.1']
    #allocation13 [shape = 'u8[65536]{0}', space=vmem, size = 0x10000, scoped, tag = 'input window, operand 8, single buffered']
    #allocation14 [shape = 'u8[12288]{0}', space=vmem, size = 0x3000, scoped, tag = 'input window, operand 10, single buffered']
    #allocation15 [shape = 's32[1]{0}', space=sflag, size = 0x4, scoped, tag = 'scoped memory for tpu_custom_call.1']
    #allocation16 [shape = 'u8[4096]{0}', space=vmem, size = 0x1000, scoped, tag = 'output window, operand 1, single buffered']
    %18 = vsyncpa [#allocation3], 0
    %19 = vsyncpa [#allocation6], 0
    %20 = vsyncpa [#allocation9], 0
    %21 = vsyncpa [#allocation12], 0
    %22 = vsyncpa [#allocation15], 0
    %23 = vsyncpa [#allocation4], 0
    // Predicated region
    $region2: #{tpu_custom_call.1} parent=1 // pred_check
      _
    $region3: #{tpu_custom_call.1} parent=1 // pred_check_branch
      %25 = sbr.rel (0) target = $region5
    $region4: #{tpu_custom_call.1} parent=1 // pred_region
      _
    $region5: #{tpu_custom_call.1} parent=1 // pred_fallthru
      _
    // Predicated region
    $region6: #{tpu_custom_call.1} parent=1 // pred_check
      _
    $region7: #{tpu_custom_call.1} parent=1 // pred_check_branch
      %27 = sbr.rel (0) target = $region9
    $region8: #{tpu_custom_call.1} parent=1 // pred_region
      %s29 = ssub.s32 128, 128
      %30 = vsyncadd [#allocation3], %s29
      %s32 = sshll.u32 [#allocation2], 4
      %s33 = int_to_ptr.vmem [resolvable:$true] %s32
      %35 = dma.hbm_to_vmem [thread:$0]  %s1, 128, %s33, [#allocation3]
    $region9: #{tpu_custom_call.1} parent=1 // pred_fallthru
      _
    // Predicated region
    $region10: #{tpu_custom_call.1} parent=1 // pred_check
      _
    $region11: #{tpu_custom_call.1} parent=1 // pred_check_branch
      %37 = sbr.rel (0) target = $region13
    $region12: #{tpu_custom_call.1} parent=1 // pred_region
      %s39 = ssub.s32 256, 256
      %40 = vsyncadd [#allocation6], %s39
      %s41 = sshll.u32 [#allocation5], 4
      %s42 = int_to_ptr.vmem [resolvable:$true] %s41
      %47 = dma.hbm_to_vmem [thread:$0]  %s2, 256, %s42, [#allocation6], 128, 128, 8
    $region13: #{tpu_custom_call.1} parent=1 // pred_fallthru
      _
    // Predicated region
    $region14: #{tpu_custom_call.1} parent=1 // pred_check
      _
    $region15: #{tpu_custom_call.1} parent=1 // pred_check_branch
      %49 = sbr.rel (0) target = $region17
    $region16: #{tpu_custom_call.1} parent=1 // pred_region
      %s51 = ssub.s32 512, 512
      %52 = vsyncadd [#allocation6], %s51
      %s53 = sshll.u32 [#allocation7], 4
      %s54 = int_to_ptr.vmem [resolvable:$true] %s53
      %59 = dma.hbm_to_vmem [thread:$0]  %s3, 512, %s54, [#allocation6], 64, 64, 4
    $region17: #{tpu_custom_call.1} parent=1 // pred_fallthru
      _
    // Predicated region
    $region18: #{tpu_custom_call.1} parent=1 // pred_check
      _
    $region19: #{tpu_custom_call.1} parent=1 // pred_check_branch
      %61 = sbr.rel (0) target = $region21
    $region20: #{tpu_custom_call.1} parent=1 // pred_region
      %s63 = ssub.s32 512, 512
      %64 = vsyncadd [#allocation9], %s63
      %s65 = sshll.u32 [#allocation8], 4
      %s66 = int_to_ptr.vmem [resolvable:$true] %s65
      %71 = dma.hbm_to_vmem [thread:$0]  %s4, 512, %s66, [#allocation9], 64, 64, 4
    $region21: #{tpu_custom_call.1} parent=1 // pred_fallthru
      _
    // Predicated region
    $region22: #{tpu_custom_call.1} parent=1 // pred_check
      _
    $region23: #{tpu_custom_call.1} parent=1 // pred_check_branch
      %73 = sbr.rel (0) target = $region25
    $region24: #{tpu_custom_call.1} parent=1 // pred_region
      %s75 = ssub.s32 512, 512
      %76 = vsyncadd [#allocation9], %s75
      %s77 = sshll.u32 [#allocation10], 4
      %s78 = int_to_ptr.vmem [resolvable:$true] %s77
      %83 = dma.hbm_to_vmem [thread:$0]  %s5, 512, %s78, [#allocation9], 64, 64, 4
    $region25: #{tpu_custom_call.1} parent=1 // pred_fallthru
      _
    // Predicated region
    $region26: #{tpu_custom_call.1} parent=1 // pred_check
      _
    $region27: #{tpu_custom_call.1} parent=1 // pred_check_branch
      %85 = sbr.rel (0) target = $region29
    $region28: #{tpu_custom_call.1} parent=1 // pred_region
      _
    $region29: #{tpu_custom_call.1} parent=1 // pred_fallthru
      _
    // Predicated region
    $region30: #{tpu_custom_call.1} parent=1 // pred_check
      _
    $region31: #{tpu_custom_call.1} parent=1 // pred_check_branch
      %87 = sbr.rel (0) target = $region33
    $region32: #{tpu_custom_call.1} parent=1 // pred_region
      %s89 = ssub.s32 2048, 2048
      %90 = vsyncadd [#allocation12], %s89
      %s91 = sshll.u32 [#allocation11], 4
      %s92 = int_to_ptr.vmem [resolvable:$true] %s91
      %97 = dma.hbm_to_vmem [thread:$0]  %s7, 2048, %s92, [#allocation12], 64, 64, 4
    $region33: #{tpu_custom_call.1} parent=1 // pred_fallthru
      _
    // Predicated region
    $region34: #{tpu_custom_call.1} parent=1 // pred_check
      _
    $region35: #{tpu_custom_call.1} parent=1 // pred_check_branch
      %99 = sbr.rel (0) target = $region37
    $region36: #{tpu_custom_call.1} parent=1 // pred_region
      %s101 = ssub.s32 2048, 2048
      %102 = vsyncadd [#allocation12], %s101
      %s103 = sshll.u32 [#allocation13], 4
      %s104 = int_to_ptr.vmem [resolvable:$true] %s103
      %109 = dma.hbm_to_vmem [thread:$0]  %s8, 2048, %s104, [#allocation12], 64, 64, 4
    $region37: #{tpu_custom_call.1} parent=1 // pred_fallthru
      _
    // Predicated region
    $region38: #{tpu_custom_call.1} parent=1 // pred_check
      _
    $region39: #{tpu_custom_call.1} parent=1 // pred_check_branch
      %111 = sbr.rel (0) target = $region41
    $region40: #{tpu_custom_call.1} parent=1 // pred_region
      _
    $region41: #{tpu_custom_call.1} parent=1 // pred_fallthru
      _
    // Predicated region
    $region42: #{tpu_custom_call.1} parent=1 // pred_check
      _
    $region43: #{tpu_custom_call.1} parent=1 // pred_check_branch
      %113 = sbr.rel (0) target = $region45
    $region44: #{tpu_custom_call.1} parent=1 // pred_region
      %s115 = ssub.s32 384, 384
      %116 = vsyncadd [#allocation15], %s115
      %s117 = sshll.u32 [#allocation14], 4
      %s118 = int_to_ptr.vmem [resolvable:$true] %s117
      %123 = dma.hbm_to_vmem [thread:$0]  %s10, 384, %s118, [#allocation15], 128, 128, 8
    $region45: #{tpu_custom_call.1} parent=1 // pred_fallthru
      _
    // Predicated region
    $region46: #{tpu_custom_call.1} parent=1 // pred_check
      _
    $region47: #{tpu_custom_call.1} parent=1 // pred_check_branch
      %125 = sbr.rel (0) target = $region49
    $region48: #{tpu_custom_call.1} parent=1 // pred_region
      %126 = dma.done [#allocation3], 128
    $region49: #{tpu_custom_call.1} parent=1 // pred_fallthru
      _
    // Predicated region
    $region50: #{tpu_custom_call.1} parent=1 // pred_check
      _
    $region51: #{tpu_custom_call.1} parent=1 // pred_check_branch
      %128 = sbr.rel (0) target = $region53
    $region52: #{tpu_custom_call.1} parent=1 // pred_region
      %129 = dma.done [#allocation6], 256
    $region53: #{tpu_custom_call.1} parent=1 // pred_fallthru
      _
    // Predicated region
    $region54: #{tpu_custom_call.1} parent=1 // pred_check
      _
    $region55: #{tpu_custom_call.1} parent=1 // pred_check_branch
      %131 = sbr.rel (0) target = $region57
    $region56: #{tpu_custom_call.1} parent=1 // pred_region
      %132 = dma.done [#allocation6], 512
    $region57: #{tpu_custom_call.1} parent=1 // pred_fallthru
      _
    // Predicated region
    $region58: #{tpu_custom_call.1} parent=1 // pred_check
      _
    $region59: #{tpu_custom_call.1} parent=1 // pred_check_branch
      %134 = sbr.rel (0) target = $region61
    $region60: #{tpu_custom_call.1} parent=1 // pred_region
      %135 = dma.done [#allocation9], 512
    $region61: #{tpu_custom_call.1} parent=1 // pred_fallthru
      _
    // Predicated region
    $region62: #{tpu_custom_call.1} parent=1 // pred_check
      _
    $region63: #{tpu_custom_call.1} parent=1 // pred_check_branch
      %137 = sbr.rel (0) target = $region65
    $region64: #{tpu_custom_call.1} parent=1 // pred_region
      %138 = dma.done [#allocation9], 512
    $region65: #{tpu_custom_call.1} parent=1 // pred_fallthru
      _
    // Predicated region
    $region66: #{tpu_custom_call.1} parent=1 // pred_check
      _
    $region67: #{tpu_custom_call.1} parent=1 // pred_check_branch
      %140 = sbr.rel (0) target = $region69
    $region68: #{tpu_custom_call.1} parent=1 // pred_region
      %141 = dma.done [#allocation12], 2048
    $region69: #{tpu_custom_call.1} parent=1 // pred_fallthru
      _
    // Predicated region
    $region70: #{tpu_custom_call.1} parent=1 // pred_check
      _
    $region71: #{tpu_custom_call.1} parent=1 // pred_check_branch
      %143 = sbr.rel (0) target = $region73
    $region72: #{tpu_custom_call.1} parent=1 // pred_region
      %144 = dma.done [#allocation12], 2048
    $region73: #{tpu_custom_call.1} parent=1 // pred_fallthru
      _
    // Predicated region
    $region74: #{tpu_custom_call.1} parent=1 // pred_check
      _
    $region75: #{tpu_custom_call.1} parent=1 // pred_check_branch
      %146 = sbr.rel (0) target = $region77
    $region76: #{tpu_custom_call.1} parent=1 // pred_region
      %147 = dma.done [#allocation15], 384
    $region77: #{tpu_custom_call.1} parent=1 // pred_fallthru
      _
    %v149 = vld [vmem:[%s0] sm:$0xff]
    %v150 = vld [vmem:[#allocation14] sm:$0xff]
    %v151 = vld [vmem:[#allocation14 + $0x8] sm:$0xff]
    %v152 = vld [vmem:[#allocation14 + $0x10] sm:$0x1]
    %v153 = vld [vmem:[#allocation2] sm:$0xff]
    %v154 = vld [vmem:[#allocation5] sm:$0xff]
    %v155 = vld [vmem:[#allocation5 + $0x8] sm:$0x3]
    %v156 = vlaneseq
    %v157 = vshrl.u32 %v156, 7
    %v158 = vsub.s32 0, %v157
    %v159 = vrot.slane %v150, %v158
    %vm160 = vcmask 80896
    %v162 = vsel %vm160, %v153, 0
    %vm164 = vcmask 1041408
    %v166 = vsel %vm164, %v155, 0
    %168 = vmatprep.subr.mxu0 0.0
    %169 = vmatpush1.msra.mxu0 0.0
    %170 = vmatprep.subr.mxu0 0.0
    %171 = vmatpush1.msra.mxu0 0.0
    %172 = vmatprep.subr.mxu0 0.0
    %173 = vmatpush1.msra.mxu0 0.0
    %174 = vmatprep.subr.mxu0 0.0
    %175 = vmatpush1.msra.mxu0 0.0
    %176 = vmatprep.subr.mxu0 0.0
    %177 = vmatpush1.msra.mxu0 0.0
    %178 = vmatprep.subr.mxu0 0.0
    %179 = vmatpush1.msra.mxu0 0.0
    %180 = vmatprep.subr.mxu0 0.0
    %181 = vmatpush1.msra.mxu0 0.0
    %182 = vmatprep.subr.mxu0 0.0
    %183 = vmatpush1.msra.mxu0 0.0
    %184 = vmatprep.subr.mxu0 0.0
    %185 = vmatpush1.msra.mxu0 0.0
    %186 = vmatprep.subr.mxu0 0.0
    %187 = vmatpush1.msra.mxu0 0.0
    %188 = vmatprep.subr.mxu0 0.0
    %189 = vmatpush1.msra.mxu0 0.0
    %190 = vmatprep.subr.mxu0 0.0
    %191 = vmatpush1.msra.mxu0 0.0
    %192 = vmatprep.subr.mxu0 0.0
    %193 = vmatpush1.msra.mxu0 0.0
    %194 = vmatprep.subr.mxu0 0.0
    %195 = vmatpush1.msra.mxu0 0.0
    %196 = vmatprep.subr.mxu0 0.0
    %197 = vmatpush1.msra.mxu0 %v166
    %198 = vmatprep.subr.mxu0 0.0
    %199 = vmatpush1.msra.mxu0 %v154
    %200 = vmatprep.subr.mxu0 0.0
    %201 = vmatpush2.msra.mxu0 0.0
    %202 = vmatprep.subr.mxu0 0.0
    %203 = vmatpush2.msra.mxu0 0.0
    %204 = vmatprep.subr.mxu0 0.0
    %205 = vmatpush2.msra.mxu0 0.0
    %206 = vmatprep.subr.mxu0 0.0
    %207 = vmatpush2.msra.mxu0 0.0
    %208 = vmatprep.subr.mxu0 0.0
    %209 = vmatpush2.msra.mxu0 0.0
    %210 = vmatprep.subr.mxu0 0.0
    %211 = vmatpush2.msra.mxu0 0.0
    %212 = vmatprep.subr.mxu0 0.0
    %213 = vmatpush2.msra.mxu0 0.0
    %214 = vmatprep.subr.mxu0 0.0
    %215 = vmatpush2.msra.mxu0 0.0
    %216 = vmatprep.subr.mxu0 0.0
    %217 = vmatpush2.msra.mxu0 0.0
    %218 = vmatprep.subr.mxu0 0.0
    %219 = vmatpush2.msra.mxu0 0.0
    %220 = vmatprep.subr.mxu0 0.0
    %221 = vmatpush2.msra.mxu0 0.0
    %222 = vmatprep.subr.mxu0 0.0
    %223 = vmatpush2.msra.mxu0 0.0
    %224 = vmatprep.subr.mxu0 0.0
    %225 = vmatpush2.msra.mxu0 0.0
    %226 = vmatprep.subr.mxu0 0.0
    %227 = vmatpush2.msra.mxu0 0.0
    %228 = vmatprep.subr.mxu0 0.0
    %229 = vmatpush2.msra.mxu0 0.0
    %230 = vmatprep.subr.mxu0 0.0
    %231 = vmatpush2.msra.mxu0 0.0
    %232 = vmatprep.mubr.f32.mxu0 0.0
    %233 = vmatmul.mubr.f32.gmra.mxu0 %v162
    %v234 = vpop.f32.mrf.mxu0
    %v235 = vadd.f32 %v159, %v234
    %v236 = vpop.f32.mrf.mxu0
    %237 = vdwg.mxu0
    %v238 = vpack.c.bf16 %v235, %v235
    %v239 = vld [vmem:[#allocation7] sm:$0xf]
    %v240 = vld [vmem:[#allocation7 + $0x4] sm:$0xf]
    %v241 = vld [vmem:[#allocation7 + $0x8] sm:$0xf]
    %v242 = vld [vmem:[#allocation7 + $0xc] sm:$0xf]
    %v243 = vld [vmem:[#allocation7 + $0x10] sm:$0xf]
    %v244 = vld [vmem:[#allocation7 + $0x14] sm:$0xf]
    %v245 = vld [vmem:[#allocation7 + $0x18] sm:$0xf]
    %v246 = vld [vmem:[#allocation7 + $0x1c] sm:$0xf]
    %v247 = vlaneseq
    %v248 = vshrl.u32 %v247, 7
    %v249 = vsub.s32 1, %v248
    %v250 = vrot.slane %v150, %v249
    %v259 = vunpack.c.l.b16 %v239
    %v260 = vunpack.c.l.b16 %v240
    %v261 = vunpack.c.l.b16 %v241
    %v262 = vunpack.c.l.b16 %v242
    %v263 = vunpack.c.l.b16 %v243
    %v264 = vunpack.c.l.b16 %v244
    %v265 = vunpack.c.l.b16 %v245
    %v266 = vunpack.c.l.b16 %v246
    %v267 = vpack.c.b16 %v260, %v259
    %v268 = vpack.c.b16 %v262, %v261
    %v269 = vpack.c.b16 %v264, %v263
    %v270 = vpack.c.b16 %v266, %v265
    %vm275 = vcmask 523264
    %v277 = vsel %vm275, %v238, 0
    %279 = vmatprep.subr.bf16.mxu0 0
    %280 = vmatpush1.bf16.msra.mxu0 0
    %281 = vmatprep.subr.bf16.mxu0 0
    %282 = vmatpush1.bf16.msra.mxu0 0
    %283 = vmatprep.subr.bf16.mxu0 0
    %284 = vmatpush1.bf16.msra.mxu0 0
    %285 = vmatprep.subr.bf16.mxu0 0
    %286 = vmatpush1.bf16.msra.mxu0 0
    %287 = vmatprep.subr.bf16.mxu0 0
    %288 = vmatpush1.bf16.msra.mxu0 %v270
    %289 = vmatprep.subr.bf16.mxu0 0
    %290 = vmatpush1.bf16.msra.mxu0 %v269
    %291 = vmatprep.subr.bf16.mxu0 0
    %292 = vmatpush1.bf16.msra.mxu0 %v268
    %293 = vmatprep.subr.bf16.mxu0 0
    %294 = vmatpush1.bf16.msra.mxu0 %v267
    %295 = vmatprep.subr.bf16.mxu0 0
    %296 = vmatpush2.bf16.msra.mxu0 0
    %297 = vmatprep.subr.bf16.mxu0 0
    %298 = vmatpush2.bf16.msra.mxu0 0
    %299 = vmatprep.subr.bf16.mxu0 0
    %300 = vmatpush2.bf16.msra.mxu0 0
    %301 = vmatprep.subr.bf16.mxu0 0
    %302 = vmatpush2.bf16.msra.mxu0 0
    %303 = vmatprep.subr.bf16.mxu0 0
    %304 = vmatpush2.bf16.msra.mxu0 0
    %305 = vmatprep.subr.bf16.mxu0 0
    %306 = vmatpush2.bf16.msra.mxu0 0
    %307 = vmatprep.subr.bf16.mxu0 0
    %308 = vmatpush2.bf16.msra.mxu0 0
    %309 = vmatprep.subr.bf16.mxu0 0
    %310 = vmatpush2.bf16.msra.mxu0 0
    %311 = vmatprep.mubr.bf16.mxu0 0
    %312 = vmatmul.mubr.bf16.gmra.mxu0 %v277
    %v313 = vpop.f32.mrf.mxu0
    %v314 = vadd.f32 %v250, %v313
    %v315 = vpop.f32.mrf.mxu0
    %v316 = vpop.f32.mrf.mxu0
    %v317 = vpop.f32.mrf.mxu0
    %318 = vdwg.mxu0
    %vm319 = vcmp.ge.f32.partialorder %v314, 0.0
    %v320 = vmul.f32 %v314, 0.05
    %v321 = vsel %vm319, %v314, %v320
    %v322 = vpack.c.bf16 %v321, %v321
    %v323 = vld [vmem:[#allocation8] sm:$0xf]
    %v324 = vld [vmem:[#allocation8 + $0x4] sm:$0xf]
    %v325 = vld [vmem:[#allocation8 + $0x8] sm:$0xf]
    %v326 = vld [vmem:[#allocation8 + $0xc] sm:$0xf]
    %v327 = vld [vmem:[#allocation8 + $0x10] sm:$0xf]
    %v328 = vld [vmem:[#allocation8 + $0x14] sm:$0xf]
    %v329 = vld [vmem:[#allocation8 + $0x18] sm:$0xf]
    %v330 = vld [vmem:[#allocation8 + $0x1c] sm:$0xf]
    %v331 = vlaneseq
    %v332 = vshrl.u32 %v331, 7
    %v333 = vsub.s32 2, %v332
    %v334 = vrot.slane %v150, %v333
    %v343 = vunpack.c.l.b16 %v323
    %v344 = vunpack.c.l.b16 %v324
    %v345 = vunpack.c.l.b16 %v325
    %v346 = vunpack.c.l.b16 %v326
    %v347 = vunpack.c.l.b16 %v327
    %v348 = vunpack.c.l.b16 %v328
    %v349 = vunpack.c.l.b16 %v329
    %v350 = vunpack.c.l.b16 %v330
    %v351 = vpack.c.b16 %v344, %v343
    %v352 = vpack.c.b16 %v346, %v345
    %v353 = vpack.c.b16 %v348, %v347
    %v354 = vpack.c.b16 %v350, %v349
    %v360 = vsel %vm275, %v322, 0
    %362 = vmatprep.subr.bf16.mxu0 0
    %363 = vmatpush1.bf16.msra.mxu0 0
    %364 = vmatprep.subr.bf16.mxu0 0
    %365 = vmatpush1.bf16.msra.mxu0 0
    %366 = vmatprep.subr.bf16.mxu0 0
    %367 = vmatpush1.bf16.msra.mxu0 0
    %368 = vmatprep.subr.bf16.mxu0 0
    %369 = vmatpush1.bf16.msra.mxu0 0
    %370 = vmatprep.subr.bf16.mxu0 0
    %371 = vmatpush1.bf16.msra.mxu0 %v354
    %372 = vmatprep.subr.bf16.mxu0 0
    %373 = vmatpush1.bf16.msra.mxu0 %v353
    %374 = vmatprep.subr.bf16.mxu0 0
    %375 = vmatpush1.bf16.msra.mxu0 %v352
    %376 = vmatprep.subr.bf16.mxu0 0
    %377 = vmatpush1.bf16.msra.mxu0 %v351
    %378 = vmatprep.subr.bf16.mxu0 0
    %379 = vmatpush2.bf16.msra.mxu0 0
    %380 = vmatprep.subr.bf16.mxu0 0
    %381 = vmatpush2.bf16.msra.mxu0 0
    %382 = vmatprep.subr.bf16.mxu0 0
    %383 = vmatpush2.bf16.msra.mxu0 0
    %384 = vmatprep.subr.bf16.mxu0 0
    %385 = vmatpush2.bf16.msra.mxu0 0
    %386 = vmatprep.subr.bf16.mxu0 0
    %387 = vmatpush2.bf16.msra.mxu0 0
    %388 = vmatprep.subr.bf16.mxu0 0
    %389 = vmatpush2.bf16.msra.mxu0 0
    %390 = vmatprep.subr.bf16.mxu0 0
    %391 = vmatpush2.bf16.msra.mxu0 0
    %392 = vmatprep.subr.bf16.mxu0 0
    %393 = vmatpush2.bf16.msra.mxu0 0
    %394 = vmatprep.mubr.bf16.mxu0 0
    %395 = vmatmul.mubr.bf16.gmra.mxu0 %v360
    %v396 = vpop.f32.mrf.mxu0
    %v397 = vadd.f32 %v334, %v396
    %v398 = vpop.f32.mrf.mxu0
    %v399 = vpop.f32.mrf.mxu0
    %v400 = vpop.f32.mrf.mxu0
    %401 = vdwg.mxu0
    %vm402 = vcmask 64512
    %v403 = vsel %vm402, %v149, 0.0
    %404 = vadd.xlane.f32.xlu0 %v403
    %v405 = vpop.xlane.xlu0 %404
    %v406 = vmax.f32 %v405, 1.0
    %v407 = vrot.slane %v403, 4
    %v408 = vadd.f32 %v403, %v407
    %v409 = vrot.slane %v408, 2
    %v410 = vadd.f32 %v408, %v409
    %v411 = vrot.slane %v410, 1
    %v412 = vadd.f32 %v410, %v411
    %v413 = vmax.f32 %v412, 1.0
    %v414 = vrsqrt.pop %v406
    %v415 = vmul.f32 %v149, %v414
    %v416 = vrsqrt.pop %v413
    %v417 = vmul.f32 %v415, %v416
    %v419 = vsel %vm402, %v417, 0
    %421 = vmatprep.subr.mxu0 0.0
    %422 = vmatpush1.msra.mxu0 0.0
    %423 = vmatprep.subr.mxu0 0.0
    %424 = vmatpush1.msra.mxu0 0.0
    %425 = vmatprep.subr.mxu0 0.0
    %426 = vmatpush1.msra.mxu0 0.0
    %427 = vmatprep.subr.mxu0 0.0
    %428 = vmatpush1.msra.mxu0 0.0
    %429 = vmatprep.subr.mxu0 0.0
    %430 = vmatpush1.msra.mxu0 0.0
    %431 = vmatprep.subr.mxu0 0.0
    %432 = vmatpush1.msra.mxu0 0.0
    %433 = vmatprep.subr.mxu0 0.0
    %434 = vmatpush1.msra.mxu0 0.0
    %435 = vmatprep.subr.mxu0 0.0
    %436 = vmatpush1.msra.mxu0 0.0
    %437 = vmatprep.subr.mxu0 0.0
    %438 = vmatpush1.msra.mxu0 0.0
    %439 = vmatprep.subr.mxu0 0.0
    %440 = vmatpush1.msra.mxu0 0.0
    %441 = vmatprep.subr.mxu0 0.0
    %442 = vmatpush1.msra.mxu0 0.0
    %443 = vmatprep.subr.mxu0 0.0
    %444 = vmatpush1.msra.mxu0 0.0
    %445 = vmatprep.subr.mxu0 0.0
    %446 = vmatpush1.msra.mxu0 0.0
    %447 = vmatprep.subr.mxu0 0.0
    %448 = vmatpush1.msra.mxu0 0.0
    %449 = vmatprep.subr.mxu0 0.0
    %450 = vmatpush1.msra.mxu0 0.0
    %451 = vmatprep.subr.mxu0 0.0
    %452 = vmatpush1.msra.mxu0 %v397
    %453 = vmatprep.subr.mxu0 0.0
    %454 = vmatpush2.msra.mxu0 0.0
    %455 = vmatprep.subr.mxu0 0.0
    %456 = vmatpush2.msra.mxu0 0.0
    %457 = vmatprep.subr.mxu0 0.0
    %458 = vmatpush2.msra.mxu0 0.0
    %459 = vmatprep.subr.mxu0 0.0
    %460 = vmatpush2.msra.mxu0 0.0
    %461 = vmatprep.subr.mxu0 0.0
    %462 = vmatpush2.msra.mxu0 0.0
    %463 = vmatprep.subr.mxu0 0.0
    %464 = vmatpush2.msra.mxu0 0.0
    %465 = vmatprep.subr.mxu0 0.0
    %466 = vmatpush2.msra.mxu0 0.0
    %467 = vmatprep.subr.mxu0 0.0
    %468 = vmatpush2.msra.mxu0 0.0
    %469 = vmatprep.subr.mxu0 0.0
    %470 = vmatpush2.msra.mxu0 0.0
    %471 = vmatprep.subr.mxu0 0.0
    %472 = vmatpush2.msra.mxu0 0.0
    %473 = vmatprep.subr.mxu0 0.0
    %474 = vmatpush2.msra.mxu0 0.0
    %475 = vmatprep.subr.mxu0 0.0
    %476 = vmatpush2.msra.mxu0 0.0
    %477 = vmatprep.subr.mxu0 0.0
    %478 = vmatpush2.msra.mxu0 0.0
    %479 = vmatprep.subr.mxu0 0.0
    %480 = vmatpush2.msra.mxu0 0.0
    %481 = vmatprep.subr.mxu0 0.0
    %482 = vmatpush2.msra.mxu0 0.0
    %483 = vmatprep.subr.mxu0 0.0
    %484 = vmatpush2.msra.mxu0 0.0
    %485 = vmatprep.mubr.f32.mxu0 0.0
    %486 = vmatmul.mubr.f32.gmra.mxu0 %v419
    %v487 = vpop.f32.mrf.mxu0
    %v488 = vadd.f32 0.0, %v487
    %v489 = vpop.f32.mrf.mxu0
    %490 = vdwg.mxu0
    %v491 = vpack.c.bf16 %v488, %v488
    %v492 = vld [vmem:[#allocation10] sm:$0xf]
    %v493 = vld [vmem:[#allocation10 + $0x4] sm:$0xf]
    %v494 = vld [vmem:[#allocation10 + $0x8] sm:$0xf]
    %v495 = vld [vmem:[#allocation10 + $0xc] sm:$0xf]
    %v496 = vld [vmem:[#allocation10 + $0x10] sm:$0xf]
    %v497 = vld [vmem:[#allocation10 + $0x14] sm:$0xf]
    %v498 = vld [vmem:[#allocation10 + $0x18] sm:$0xf]
    %v499 = vld [vmem:[#allocation10 + $0x1c] sm:$0xf]
    %v500 = vlaneseq
    %v501 = vshrl.u32 %v500, 7
    %v502 = vsub.s32 3, %v501
    %v503 = vrot.slane %v150, %v502
    %v512 = vunpack.c.l.b16 %v492
    %v513 = vunpack.c.l.b16 %v493
    %v514 = vunpack.c.l.b16 %v494
    %v515 = vunpack.c.l.b16 %v495
    %v516 = vunpack.c.l.b16 %v496
    %v517 = vunpack.c.l.b16 %v497
    %v518 = vunpack.c.l.b16 %v498
    %v519 = vunpack.c.l.b16 %v499
    %v520 = vpack.c.b16 %v513, %v512
    %v521 = vpack.c.b16 %v515, %v514
    %v522 = vpack.c.b16 %v517, %v516
    %v523 = vpack.c.b16 %v519, %v518
    %v529 = vsel %vm275, %v491, 0
    %531 = vmatprep.subr.bf16.mxu0 0
    %532 = vmatpush1.bf16.msra.mxu0 0
    %533 = vmatprep.subr.bf16.mxu0 0
    %534 = vmatpush1.bf16.msra.mxu0 0
    %535 = vmatprep.subr.bf16.mxu0 0
    %536 = vmatpush1.bf16.msra.mxu0 0
    %537 = vmatprep.subr.bf16.mxu0 0
    %538 = vmatpush1.bf16.msra.mxu0 0
    %539 = vmatprep.subr.bf16.mxu0 0
    %540 = vmatpush1.bf16.msra.mxu0 %v523
    %541 = vmatprep.subr.bf16.mxu0 0
    %542 = vmatpush1.bf16.msra.mxu0 %v522
    %543 = vmatprep.subr.bf16.mxu0 0
    %544 = vmatpush1.bf16.msra.mxu0 %v521
    %545 = vmatprep.subr.bf16.mxu0 0
    %546 = vmatpush1.bf16.msra.mxu0 %v520
    %547 = vmatprep.subr.bf16.mxu0 0
    %548 = vmatpush2.bf16.msra.mxu0 0
    %549 = vmatprep.subr.bf16.mxu0 0
    %550 = vmatpush2.bf16.msra.mxu0 0
    %551 = vmatprep.subr.bf16.mxu0 0
    %552 = vmatpush2.bf16.msra.mxu0 0
    %553 = vmatprep.subr.bf16.mxu0 0
    %554 = vmatpush2.bf16.msra.mxu0 0
    %555 = vmatprep.subr.bf16.mxu0 0
    %556 = vmatpush2.bf16.msra.mxu0 0
    %557 = vmatprep.subr.bf16.mxu0 0
    %558 = vmatpush2.bf16.msra.mxu0 0
    %559 = vmatprep.subr.bf16.mxu0 0
    %560 = vmatpush2.bf16.msra.mxu0 0
    %561 = vmatprep.subr.bf16.mxu0 0
    %562 = vmatpush2.bf16.msra.mxu0 0
    %563 = vmatprep.mubr.bf16.mxu0 0
    %564 = vmatmul.mubr.bf16.gmra.mxu0 %v529
    %v565 = vpop.f32.mrf.mxu0
    %v566 = vadd.f32 %v503, %v565
    %v567 = vpop.f32.mrf.mxu0
    %v568 = vpop.f32.mrf.mxu0
    %v569 = vpop.f32.mrf.mxu0
    %570 = vdwg.mxu0
    %v571 = vsel %vm275, %v566, 0.0
    %572 = vadd.xlane.f32.xlu0 %v571
    %v573 = vpop.xlane.xlu0 %572
    %v574 = vrcp.pop 64.0
    %v575 = vmul.f32 %v573, %v574
    %v576 = vsub.f32 %v566, %v575
    %v577 = vmul.f32 %v576, %v576
    %v578 = vsel %vm275, %v577, 0.0
    %579 = vadd.xlane.f32.xlu0 %v578
    %v580 = vpop.xlane.xlu0 %579
    %v581 = vmul.f32 %v580, %v574
    %v582 = vadd.f32 %v581, 1e-05
    %v583 = vrsqrt.pop %v582
    %v584 = vmul.f32 %v576, %v583
    %v585 = vlaneseq
    %v586 = vshrl.u32 %v585, 7
    %v587 = vsub.s32 4, %v586
    %v588 = vrot.slane %v150, %v587
    %v589 = vmul.f32 %v584, %v588
    %v590 = vlaneseq
    %v591 = vshrl.u32 %v590, 7
    %v592 = vsub.s32 5, %v591
    %v593 = vrot.slane %v150, %v592
    %v594 = vadd.f32 %v589, %v593
    %v595 = vsub.f32 %v594, %v397
    %v596 = vlaneseq
    %v597 = vshrl.u32 %v596, 7
    %v598 = vsub.s32 6, %v597
    %v599 = vrot.slane %v150, %v598
    %v600 = vmul.f32 %v397, %v599
    %v601 = vsel %vm275, %v600, 0.0
    %602 = vadd.xlane.f32.xlu0 %v601
    %v603 = vpop.xlane.xlu0 %602
    %v604 = vlaneseq
    %v605 = vshrl.u32 %v604, 7
    %v606 = vsub.s32 7, %v605
    %v607 = vrot.slane %v150, %v606
    %v608 = vadd.f32 %v603, %v607
    %vm609 = vcmask 7168
    %v610 = vsel %vm609, %v608, -inf
    %v611 = vrot.slane %v610, 4
    %v612 = vmax.f32 %v610, %v611
    %v613 = vrot.slane %v612, 2
    %v614 = vmax.f32 %v612, %v613
    %v615 = vrot.slane %v614, 1
    %v616 = vmax.f32 %v614, %v615
    %v617 = vsub.f32 %v608, %v616
    %v618 = vmul.f32 %v617, 1.442695
    %v619 = vpow.pop %v618
    %v620 = vsel %vm609, %v619, 0.0
    %v621 = vrot.slane %v620, 4
    %v622 = vadd.f32 %v620, %v621
    %v623 = vrot.slane %v622, 2
    %v624 = vadd.f32 %v622, %v623
    %v625 = vrot.slane %v624, 1
    %v626 = vadd.f32 %v624, %v625
    %v627 = vrcp.pop %v626
    %v628 = vmul.f32 %v619, %v627
    %630 = vset.pattern.permute.xlu0 0
    %631 = vperm.xlu0 %630, %v628
    %v632 = vpop.permute.xlu0 %631
    %v634 = vmul.f32 %v632, %v397
    %v635 = vsel %vm275, %v634, 0.0
    %v636 = vrot.slane %v635, 4
    %v637 = vadd.f32 %v635, %v636
    %v638 = vrot.slane %v637, 2
    %v639 = vadd.f32 %v637, %v638
    %v640 = vrot.slane %v639, 1
    %v641 = vadd.f32 %v639, %v640
    %v642 = vsub.f32 %v641, %v397
    %643 = vst.msk [vmem:[#allocation16] sm:$0xff] %vm275, %v595
    %645 = vrot.lane.b32.xlu0 %v642, 64
    %v646 = vpop.permute.xlu0 %645
    %vm648 = vcmask 1048064
    %649 = vst.msk [vmem:[#allocation16] sm:$0xff] %vm648, %v646
    %v650 = vld [vmem:[#allocation16] sm:$0xff]
    %v651 = vpack.c.bf16 %v650, %v650
    %v652 = vld [vmem:[%s6] sm:$0xf]
    %v653 = vld [vmem:[%s6 + $0x4] sm:$0xf]
    %v654 = vld [vmem:[%s6 + $0x8] sm:$0xf]
    %v655 = vld [vmem:[%s6 + $0xc] sm:$0xf]
    %v656 = vld [vmem:[%s6 + $0x10] sm:$0xf]
    %v657 = vld [vmem:[%s6 + $0x14] sm:$0xf]
    %v658 = vld [vmem:[%s6 + $0x18] sm:$0xf]
    %v659 = vld [vmem:[%s6 + $0x1c] sm:$0xf]
    %v660 = vld [vmem:[%s6 + $0x20] sm:$0xf]
    %v661 = vld [vmem:[%s6 + $0x24] sm:$0xf]
    %v662 = vld [vmem:[%s6 + $0x28] sm:$0xf]
    %v663 = vld [vmem:[%s6 + $0x2c] sm:$0xf]
    %v664 = vld [vmem:[%s6 + $0x30] sm:$0xf]
    %v665 = vld [vmem:[%s6 + $0x34] sm:$0xf]
    %v666 = vld [vmem:[%s6 + $0x38] sm:$0xf]
    %v667 = vld [vmem:[%s6 + $0x3c] sm:$0xf]
    %v668 = vlaneseq
    %v669 = vshrl.u32 %v668, 7
    %v670 = vsub.s32 0, %v669
    %v671 = vrot.slane %v151, %v670
    %v688 = vunpack.c.l.b16 %v652
    %v689 = vunpack.c.l.b16 %v653
    %v690 = vunpack.c.l.b16 %v654
    %v691 = vunpack.c.l.b16 %v655
    %v692 = vunpack.c.l.b16 %v656
    %v693 = vunpack.c.l.b16 %v657
    %v694 = vunpack.c.l.b16 %v658
    %v695 = vunpack.c.l.b16 %v659
    %v696 = vunpack.c.l.b16 %v660
    %v697 = vunpack.c.l.b16 %v661
    %v698 = vunpack.c.l.b16 %v662
    %v699 = vunpack.c.l.b16 %v663
    %v700 = vunpack.c.l.b16 %v664
    %v701 = vunpack.c.l.b16 %v665
    %v702 = vunpack.c.l.b16 %v666
    %v703 = vunpack.c.l.b16 %v667
    %v704 = vpack.c.b16 %v689, %v688
    %v705 = vpack.c.b16 %v691, %v690
    %v706 = vpack.c.b16 %v693, %v692
    %v707 = vpack.c.b16 %v695, %v694
    %v708 = vpack.c.b16 %v697, %v696
    %v709 = vpack.c.b16 %v699, %v698
    %v710 = vpack.c.b16 %v701, %v700
    %v711 = vpack.c.b16 %v703, %v702
    %720 = vmatprep.subr.bf16.mxu0 0
    %721 = vmatpush1.bf16.msra.mxu0 %v711
    %722 = vmatprep.subr.bf16.mxu0 0
    %723 = vmatpush1.bf16.msra.mxu0 %v710
    %724 = vmatprep.subr.bf16.mxu0 0
    %725 = vmatpush1.bf16.msra.mxu0 %v709
    %726 = vmatprep.subr.bf16.mxu0 0
    %727 = vmatpush1.bf16.msra.mxu0 %v708
    %728 = vmatprep.subr.bf16.mxu0 0
    %729 = vmatpush1.bf16.msra.mxu0 %v707
    %730 = vmatprep.subr.bf16.mxu0 0
    %731 = vmatpush1.bf16.msra.mxu0 %v706
    %732 = vmatprep.subr.bf16.mxu0 0
    %733 = vmatpush1.bf16.msra.mxu0 %v705
    %734 = vmatprep.subr.bf16.mxu0 0
    %735 = vmatpush1.bf16.msra.mxu0 %v704
    %736 = vmatprep.subr.bf16.mxu0 0
    %737 = vmatpush2.bf16.msra.mxu0 0
    %738 = vmatprep.subr.bf16.mxu0 0
    %739 = vmatpush2.bf16.msra.mxu0 0
    %740 = vmatprep.subr.bf16.mxu0 0
    %741 = vmatpush2.bf16.msra.mxu0 0
    %742 = vmatprep.subr.bf16.mxu0 0
    %743 = vmatpush2.bf16.msra.mxu0 0
    %744 = vmatprep.subr.bf16.mxu0 0
    %745 = vmatpush2.bf16.msra.mxu0 0
    %746 = vmatprep.subr.bf16.mxu0 0
    %747 = vmatpush2.bf16.msra.mxu0 0
    %748 = vmatprep.subr.bf16.mxu0 0
    %749 = vmatpush2.bf16.msra.mxu0 0
    %750 = vmatprep.subr.bf16.mxu0 0
    %751 = vmatpush2.bf16.msra.mxu0 0
    %752 = vmatprep.mubr.bf16.mxu0 0
    %753 = vmatmul.mubr.bf16.gmra.mxu0 %v651
    %v754 = vpop.f32.mrf.mxu0
    %v755 = vadd.f32 %v671, %v754
    %v756 = vpop.f32.mrf.mxu0
    %v757 = vpop.f32.mrf.mxu0
    %v758 = vpop.f32.mrf.mxu0
    %759 = vdwg.mxu0
    %v760 = vmax.f32 %v755, 0.0
    %vm761 = vcmp.gt.f32.partialorder %v149, 0.0
    %v762 = vsel %vm761, 1, 0
    %763 = vset.pattern.permute.xlu0 0
    %764 = vperm.xlu0 %763, %v762
    %v765 = vpop.permute.xlu0 %764
    %vm766 = vcmp.eq.s32.totalorder %v765, 1
    %v767 = vlaneseq
    %v768 = vshrl.u32 %v767, 7
    %v769 = vsub.s32 0, %v768
    %v770 = vrot.slane %v760, %v769
    %v771 = vsel %vm766, %v770, 0.0
    %v772 = vmax.f32 %v771, 0.0
    %773 = vset.pattern.permute.xlu0 1
    %774 = vperm.xlu0 %773, %v762
    %v775 = vpop.permute.xlu0 %774
    %vm776 = vcmp.eq.s32.totalorder %v775, 1
    %v777 = vlaneseq
    %v778 = vshrl.u32 %v777, 7
    %v779 = vsub.s32 1, %v778
    %v780 = vrot.slane %v760, %v779
    %v781 = vsel %vm776, %v780, 0.0
    %v782 = vmax.f32 %v772, %v781
    %783 = vset.pattern.permute.xlu0 2
    %784 = vperm.xlu0 %783, %v762
    %v785 = vpop.permute.xlu0 %784
    %vm786 = vcmp.eq.s32.totalorder %v785, 1
    %v787 = vlaneseq
    %v788 = vshrl.u32 %v787, 7
    %v789 = vsub.s32 2, %v788
    %v790 = vrot.slane %v760, %v789
    %v791 = vsel %vm786, %v790, 0.0
    %v792 = vmax.f32 %v782, %v791
    %793 = vset.pattern.permute.xlu0 3
    %794 = vperm.xlu0 %793, %v762
    %v795 = vpop.permute.xlu0 %794
    %vm796 = vcmp.eq.s32.totalorder %v795, 1
    %v797 = vlaneseq
    %v798 = vshrl.u32 %v797, 7
    %v799 = vsub.s32 3, %v798
    %v800 = vrot.slane %v760, %v799
    %v801 = vsel %vm796, %v800, 0.0
    %v802 = vmax.f32 %v792, %v801
    %803 = vset.pattern.permute.xlu0 4
    %804 = vperm.xlu0 %803, %v762
    %v805 = vpop.permute.xlu0 %804
    %vm806 = vcmp.eq.s32.totalorder %v805, 1
    %v807 = vlaneseq
    %v808 = vshrl.u32 %v807, 7
    %v809 = vsub.s32 4, %v808
    %v810 = vrot.slane %v760, %v809
    %v811 = vsel %vm806, %v810, 0.0
    %v812 = vmax.f32 %v802, %v811
    %813 = vset.pattern.permute.xlu0 5
    %814 = vperm.xlu0 %813, %v762
    %v815 = vpop.permute.xlu0 %814
    %vm816 = vcmp.eq.s32.totalorder %v815, 1
    %v817 = vlaneseq
    %v818 = vshrl.u32 %v817, 7
    %v819 = vsub.s32 5, %v818
    %v820 = vrot.slane %v760, %v819
    %v821 = vsel %vm816, %v820, 0.0
    %v822 = vmax.f32 %v812, %v821
    %823 = vset.pattern.permute.xlu0 6
    %824 = vperm.xlu0 %823, %v762
    %v825 = vpop.permute.xlu0 %824
    %vm826 = vcmp.eq.s32.totalorder %v825, 1
    %v827 = vlaneseq
    %v828 = vshrl.u32 %v827, 7
    %v829 = vsub.s32 6, %v828
    %v830 = vrot.slane %v760, %v829
    %v831 = vsel %vm826, %v830, 0.0
    %v832 = vmax.f32 %v822, %v831
    %833 = vset.pattern.permute.xlu0 7
    %834 = vperm.xlu0 %833, %v762
    %v835 = vpop.permute.xlu0 %834
    %vm836 = vcmp.eq.s32.totalorder %v835, 1
    %v837 = vlaneseq
    %v838 = vshrl.u32 %v837, 7
    %v839 = vsub.s32 7, %v838
    %v840 = vrot.slane %v760, %v839
    %v841 = vsel %vm836, %v840, 0.0
    %v842 = vmax.f32 %v832, %v841
    %v843 = vld [vmem:[#allocation11] sm:$0xf]
    %v844 = vld [vmem:[#allocation11 + $0x4] sm:$0xf]
    %v845 = vld [vmem:[#allocation11 + $0x8] sm:$0xf]
    %v846 = vld [vmem:[#allocation11 + $0xc] sm:$0xf]
    %v847 = vld [vmem:[#allocation11 + $0x10] sm:$0xf]
    %v848 = vld [vmem:[#allocation11 + $0x14] sm:$0xf]
    %v849 = vld [vmem:[#allocation11 + $0x18] sm:$0xf]
    %v850 = vld [vmem:[#allocation11 + $0x1c] sm:$0xf]
    %v851 = vld [vmem:[#allocation11 + $0x20] sm:$0xf]
    %v852 = vld [vmem:[#allocation11 + $0x24] sm:$0xf]
    %v853 = vld [vmem:[#allocation11 + $0x28] sm:$0xf]
    %v854 = vld [vmem:[#allocation11 + $0x2c] sm:$0xf]
    %v855 = vld [vmem:[#allocation11 + $0x30] sm:$0xf]
    %v856 = vld [vmem:[#allocation11 + $0x34] sm:$0xf]
    %v857 = vld [vmem:[#allocation11 + $0x38] sm:$0xf]
    %v858 = vld [vmem:[#allocation11 + $0x3c] sm:$0xf]
    %v859 = vpack.c.bf16 %v842, %v842
    %v860 = vld [vmem:[#allocation13] sm:$0xf]
    %v861 = vld [vmem:[#allocation13 + $0x4] sm:$0xf]
    %v862 = vld [vmem:[#allocation13 + $0x8] sm:$0xf]
    %v863 = vld [vmem:[#allocation13 + $0xc] sm:$0xf]
    %v864 = vld [vmem:[#allocation13 + $0x10] sm:$0xf]
    %v865 = vld [vmem:[#allocation13 + $0x14] sm:$0xf]
    %v866 = vld [vmem:[#allocation13 + $0x18] sm:$0xf]
    %v867 = vld [vmem:[#allocation13 + $0x1c] sm:$0xf]
    %v868 = vld [vmem:[#allocation13 + $0x20] sm:$0xf]
    %v869 = vld [vmem:[#allocation13 + $0x24] sm:$0xf]
    %v870 = vld [vmem:[#allocation13 + $0x28] sm:$0xf]
    %v871 = vld [vmem:[#allocation13 + $0x2c] sm:$0xf]
    %v872 = vld [vmem:[#allocation13 + $0x30] sm:$0xf]
    %v873 = vld [vmem:[#allocation13 + $0x34] sm:$0xf]
    %v874 = vld [vmem:[#allocation13 + $0x38] sm:$0xf]
    %v875 = vld [vmem:[#allocation13 + $0x3c] sm:$0xf]
    %v892 = vunpack.c.l.b16 %v860
    %v893 = vunpack.c.l.b16 %v861
    %v894 = vunpack.c.l.b16 %v862
    %v895 = vunpack.c.l.b16 %v863
    %v896 = vunpack.c.l.b16 %v864
    %v897 = vunpack.c.l.b16 %v865
    %v898 = vunpack.c.l.b16 %v866
    %v899 = vunpack.c.l.b16 %v867
    %v900 = vunpack.c.l.b16 %v868
    %v901 = vunpack.c.l.b16 %v869
    %v902 = vunpack.c.l.b16 %v870
    %v903 = vunpack.c.l.b16 %v871
    %v904 = vunpack.c.l.b16 %v872
    %v905 = vunpack.c.l.b16 %v873
    %v906 = vunpack.c.l.b16 %v874
    %v907 = vunpack.c.l.b16 %v875
    %v908 = vpack.c.b16 %v893, %v892
    %v909 = vpack.c.b16 %v895, %v894
    %v910 = vpack.c.b16 %v897, %v896
    %v911 = vpack.c.b16 %v899, %v898
    %v912 = vpack.c.b16 %v901, %v900
    %v913 = vpack.c.b16 %v903, %v902
    %v914 = vpack.c.b16 %v905, %v904
    %v915 = vpack.c.b16 %v907, %v906
    %924 = vmatprep.subr.bf16.mxu0 0
    %925 = vmatpush1.bf16.msra.mxu0 %v915
    %926 = vmatprep.subr.bf16.mxu0 0
    %927 = vmatpush1.bf16.msra.mxu0 %v914
    %928 = vmatprep.subr.bf16.mxu0 0
    %929 = vmatpush1.bf16.msra.mxu0 %v913
    %930 = vmatprep.subr.bf16.mxu0 0
    %931 = vmatpush1.bf16.msra.mxu0 %v912
    %932 = vmatprep.subr.bf16.mxu0 0
    %933 = vmatpush1.bf16.msra.mxu0 %v911
    %934 = vmatprep.subr.bf16.mxu0 0
    %935 = vmatpush1.bf16.msra.mxu0 %v910
    %936 = vmatprep.subr.bf16.mxu0 0
    %937 = vmatpush1.bf16.msra.mxu0 %v909
    %938 = vmatprep.subr.bf16.mxu0 0
    %939 = vmatpush1.bf16.msra.mxu0 %v908
    %940 = vmatprep.subr.bf16.mxu0 0
    %941 = vmatpush2.bf16.msra.mxu0 0
    %942 = vmatprep.subr.bf16.mxu0 0
    %943 = vmatpush2.bf16.msra.mxu0 0
    %944 = vmatprep.subr.bf16.mxu0 0
    %945 = vmatpush2.bf16.msra.mxu0 0
    %946 = vmatprep.subr.bf16.mxu0 0
    %947 = vmatpush2.bf16.msra.mxu0 0
    %948 = vmatprep.subr.bf16.mxu0 0
    %949 = vmatpush2.bf16.msra.mxu0 0
    %950 = vmatprep.subr.bf16.mxu0 0
    %951 = vmatpush2.bf16.msra.mxu0 0
    %952 = vmatprep.subr.bf16.mxu0 0
    %953 = vmatpush2.bf16.msra.mxu0 0
    %954 = vmatprep.subr.bf16.mxu0 0
    %955 = vmatpush2.bf16.msra.mxu0 0
    %956 = vmatprep.mubr.bf16.mxu0 0
    %957 = vmatmul.mubr.bf16.gmra.mxu0 %v859
    %v958 = vpop.f32.mrf.mxu0
    %v959 = vadd.f32 0.0, %v958
    %v960 = vpop.f32.mrf.mxu0
    %v961 = vpop.f32.mrf.mxu0
    %v962 = vpop.f32.mrf.mxu0
    %963 = vdwg.mxu0
    %v980 = vunpack.c.l.b16 %v843
    %v981 = vunpack.c.l.b16 %v844
    %v982 = vunpack.c.l.b16 %v845
    %v983 = vunpack.c.l.b16 %v846
    %v984 = vunpack.c.l.b16 %v847
    %v985 = vunpack.c.l.b16 %v848
    %v986 = vunpack.c.l.b16 %v849
    %v987 = vunpack.c.l.b16 %v850
    %v988 = vunpack.c.l.b16 %v851
    %v989 = vunpack.c.l.b16 %v852
    %v990 = vunpack.c.l.b16 %v853
    %v991 = vunpack.c.l.b16 %v854
    %v992 = vunpack.c.l.b16 %v855
    %v993 = vunpack.c.l.b16 %v856
    %v994 = vunpack.c.l.b16 %v857
    %v995 = vunpack.c.l.b16 %v858
    %v996 = vpack.c.b16 %v981, %v980
    %v997 = vpack.c.b16 %v983, %v982
    %v998 = vpack.c.b16 %v985, %v984
    %v999 = vpack.c.b16 %v987, %v986
    %v1000 = vpack.c.b16 %v989, %v988
    %v1001 = vpack.c.b16 %v991, %v990
    %v1002 = vpack.c.b16 %v993, %v992
    %v1003 = vpack.c.b16 %v995, %v994
    %1012 = vmatprep.subr.bf16.mxu0 0
    %1013 = vmatpush1.bf16.msra.mxu0 %v1003
    %1014 = vmatprep.subr.bf16.mxu0 0
    %1015 = vmatpush1.bf16.msra.mxu0 %v1002
    %1016 = vmatprep.subr.bf16.mxu0 0
    %1017 = vmatpush1.bf16.msra.mxu0 %v1001
    %1018 = vmatprep.subr.bf16.mxu0 0
    %1019 = vmatpush1.bf16.msra.mxu0 %v1000
    %1020 = vmatprep.subr.bf16.mxu0 0
    %1021 = vmatpush1.bf16.msra.mxu0 %v999
    %1022 = vmatprep.subr.bf16.mxu0 0
    %1023 = vmatpush1.bf16.msra.mxu0 %v998
    %1024 = vmatprep.subr.bf16.mxu0 0
    %1025 = vmatpush1.bf16.msra.mxu0 %v997
    %1026 = vmatprep.subr.bf16.mxu0 0
    %1027 = vmatpush1.bf16.msra.mxu0 %v996
    %1028 = vmatprep.subr.bf16.mxu0 0
    %1029 = vmatpush2.bf16.msra.mxu0 0
    %1030 = vmatprep.subr.bf16.mxu0 0
    %1031 = vmatpush2.bf16.msra.mxu0 0
    %1032 = vmatprep.subr.bf16.mxu0 0
    %1033 = vmatpush2.bf16.msra.mxu0 0
    %1034 = vmatprep.subr.bf16.mxu0 0
    %1035 = vmatpush2.bf16.msra.mxu0 0
    %1036 = vmatprep.subr.bf16.mxu0 0
    %1037 = vmatpush2.bf16.msra.mxu0 0
    %1038 = vmatprep.subr.bf16.mxu0 0
    %1039 = vmatpush2.bf16.msra.mxu0 0
    %1040 = vmatprep.subr.bf16.mxu0 0
    %1041 = vmatpush2.bf16.msra.mxu0 0
    %1042 = vmatprep.subr.bf16.mxu0 0
    %1043 = vmatpush2.bf16.msra.mxu0 0
    %1044 = vmatprep.mubr.bf16.mxu0 0
    %1045 = vmatmul.mubr.bf16.gmra.mxu0 %v651
    %v1046 = vpop.f32.mrf.mxu0
    %v1047 = vadd.f32 %v959, %v1046
    %v1048 = vpop.f32.mrf.mxu0
    %v1049 = vpop.f32.mrf.mxu0
    %v1050 = vpop.f32.mrf.mxu0
    %1051 = vdwg.mxu0
    %v1052 = vlaneseq
    %v1053 = vshrl.u32 %v1052, 7
    %v1054 = vsub.s32 1, %v1053
    %v1055 = vrot.slane %v151, %v1054
    %v1056 = vadd.f32 %v1047, %v1055
    %v1057 = vadd.f32 %v1056, %v650
    %1058 = vadd.xlane.f32.xlu0 %v1057
    %v1059 = vpop.xlane.xlu0 %1058
    %v1060 = vrcp.pop 128.0
    %v1061 = vmul.f32 %v1059, %v1060
    %v1062 = vsub.f32 %v1057, %v1061
    %v1063 = vmul.f32 %v1062, %v1062
    %1064 = vadd.xlane.f32.xlu0 %v1063
    %v1065 = vpop.xlane.xlu0 %1064
    %v1066 = vmul.f32 %v1065, %v1060
    %v1067 = vadd.f32 %v1066, 1e-05
    %v1068 = vrsqrt.pop %v1067
    %v1069 = vmul.f32 %v1062, %v1068
    %v1070 = vlaneseq
    %v1071 = vshrl.u32 %v1070, 7
    %v1072 = vsub.s32 2, %v1071
    %v1073 = vrot.slane %v151, %v1072
    %v1074 = vmul.f32 %v1069, %v1073
    %v1075 = vlaneseq
    %v1076 = vshrl.u32 %v1075, 7
    %v1077 = vsub.s32 3, %v1076
    %v1078 = vrot.slane %v151, %v1077
    %v1079 = vadd.f32 %v1074, %v1078
    %v1080 = vmax.f32 %v1079, 0.0
    %v1081 = vpack.c.bf16 %v1080, %v1080
    %s1082 = scalar_lea.vmem %s6, 64
    %v1083 = vld [vmem:[%s1082] sm:$0xf]
    %v1084 = vld [vmem:[%s1082 + $0x4] sm:$0xf]
    %v1085 = vld [vmem:[%s1082 + $0x8] sm:$0xf]
    %v1086 = vld [vmem:[%s1082 + $0xc] sm:$0xf]
    %v1087 = vld [vmem:[%s1082 + $0x10] sm:$0xf]
    %v1088 = vld [vmem:[%s1082 + $0x14] sm:$0xf]
    %v1089 = vld [vmem:[%s1082 + $0x18] sm:$0xf]
    %v1090 = vld [vmem:[%s1082 + $0x1c] sm:$0xf]
    %v1091 = vld [vmem:[%s1082 + $0x20] sm:$0xf]
    %v1092 = vld [vmem:[%s1082 + $0x24] sm:$0xf]
    %v1093 = vld [vmem:[%s1082 + $0x28] sm:$0xf]
    %v1094 = vld [vmem:[%s1082 + $0x2c] sm:$0xf]
    %v1095 = vld [vmem:[%s1082 + $0x30] sm:$0xf]
    %v1096 = vld [vmem:[%s1082 + $0x34] sm:$0xf]
    %v1097 = vld [vmem:[%s1082 + $0x38] sm:$0xf]
    %v1098 = vld [vmem:[%s1082 + $0x3c] sm:$0xf]
    %v1099 = vlaneseq
    %v1100 = vshrl.u32 %v1099, 7
    %v1101 = vsub.s32 4, %v1100
    %v1102 = vrot.slane %v151, %v1101
    %v1119 = vunpack.c.l.b16 %v1083
    %v1120 = vunpack.c.l.b16 %v1084
    %v1121 = vunpack.c.l.b16 %v1085
    %v1122 = vunpack.c.l.b16 %v1086
    %v1123 = vunpack.c.l.b16 %v1087
    %v1124 = vunpack.c.l.b16 %v1088
    %v1125 = vunpack.c.l.b16 %v1089
    %v1126 = vunpack.c.l.b16 %v1090
    %v1127 = vunpack.c.l.b16 %v1091
    %v1128 = vunpack.c.l.b16 %v1092
    %v1129 = vunpack.c.l.b16 %v1093
    %v1130 = vunpack.c.l.b16 %v1094
    %v1131 = vunpack.c.l.b16 %v1095
    %v1132 = vunpack.c.l.b16 %v1096
    %v1133 = vunpack.c.l.b16 %v1097
    %v1134 = vunpack.c.l.b16 %v1098
    %v1135 = vpack.c.b16 %v1120, %v1119
    %v1136 = vpack.c.b16 %v1122, %v1121
    %v1137 = vpack.c.b16 %v1124, %v1123
    %v1138 = vpack.c.b16 %v1126, %v1125
    %v1139 = vpack.c.b16 %v1128, %v1127
    %v1140 = vpack.c.b16 %v1130, %v1129
    %v1141 = vpack.c.b16 %v1132, %v1131
    %v1142 = vpack.c.b16 %v1134, %v1133
    %1151 = vmatprep.subr.bf16.mxu0 0
    %1152 = vmatpush1.bf16.msra.mxu0 %v1142
    %1153 = vmatprep.subr.bf16.mxu0 0
    %1154 = vmatpush1.bf16.msra.mxu0 %v1141
    %1155 = vmatprep.subr.bf16.mxu0 0
    %1156 = vmatpush1.bf16.msra.mxu0 %v1140
    %1157 = vmatprep.subr.bf16.mxu0 0
    %1158 = vmatpush1.bf16.msra.mxu0 %v1139
    %1159 = vmatprep.subr.bf16.mxu0 0
    %1160 = vmatpush1.bf16.msra.mxu0 %v1138
    %1161 = vmatprep.subr.bf16.mxu0 0
    %1162 = vmatpush1.bf16.msra.mxu0 %v1137
    %1163 = vmatprep.subr.bf16.mxu0 0
    %1164 = vmatpush1.bf16.msra.mxu0 %v1136
    %1165 = vmatprep.subr.bf16.mxu0 0
    %1166 = vmatpush1.bf16.msra.mxu0 %v1135
    %1167 = vmatprep.subr.bf16.mxu0 0
    %1168 = vmatpush2.bf16.msra.mxu0 0
    %1169 = vmatprep.subr.bf16.mxu0 0
    %1170 = vmatpush2.bf16.msra.mxu0 0
    %1171 = vmatprep.subr.bf16.mxu0 0
    %1172 = vmatpush2.bf16.msra.mxu0 0
    %1173 = vmatprep.subr.bf16.mxu0 0
    %1174 = vmatpush2.bf16.msra.mxu0 0
    %1175 = vmatprep.subr.bf16.mxu0 0
    %1176 = vmatpush2.bf16.msra.mxu0 0
    %1177 = vmatprep.subr.bf16.mxu0 0
    %1178 = vmatpush2.bf16.msra.mxu0 0
    %1179 = vmatprep.subr.bf16.mxu0 0
    %1180 = vmatpush2.bf16.msra.mxu0 0
    %1181 = vmatprep.subr.bf16.mxu0 0
    %1182 = vmatpush2.bf16.msra.mxu0 0
    %1183 = vmatprep.mubr.bf16.mxu0 0
    %1184 = vmatmul.mubr.bf16.gmra.mxu0 %v1081
    %v1185 = vpop.f32.mrf.mxu0
    %v1186 = vadd.f32 %v1102, %v1185
    %v1187 = vpop.f32.mrf.mxu0
    %v1188 = vpop.f32.mrf.mxu0
    %v1189 = vpop.f32.mrf.mxu0
    %1190 = vdwg.mxu0
    %v1191 = vmax.f32 %v1186, 0.0
    %v1192 = vlaneseq
    %v1193 = vshrl.u32 %v1192, 7
    %v1194 = vsub.s32 0, %v1193
    %v1195 = vrot.slane %v1191, %v1194
    %v1196 = vsel %vm766, %v1195, 0.0
    %v1197 = vmax.f32 %v1196, 0.0
    %v1198 = vlaneseq
    %v1199 = vshrl.u32 %v1198, 7
    %v1200 = vsub.s32 1, %v1199
    %v1201 = vrot.slane %v1191, %v1200
    %v1202 = vsel %vm776, %v1201, 0.0
    %v1203 = vmax.f32 %v1197, %v1202
    %v1204 = vlaneseq
    %v1205 = vshrl.u32 %v1204, 7
    %v1206 = vsub.s32 2, %v1205
    %v1207 = vrot.slane %v1191, %v1206
    %v1208 = vsel %vm786, %v1207, 0.0
    %v1209 = vmax.f32 %v1203, %v1208
    %v1210 = vlaneseq
    %v1211 = vshrl.u32 %v1210, 7
    %v1212 = vsub.s32 3, %v1211
    %v1213 = vrot.slane %v1191, %v1212
    %v1214 = vsel %vm796, %v1213, 0.0
    %v1215 = vmax.f32 %v1209, %v1214
    %v1216 = vlaneseq
    %v1217 = vshrl.u32 %v1216, 7
    %v1218 = vsub.s32 4, %v1217
    %v1219 = vrot.slane %v1191, %v1218
    %v1220 = vsel %vm806, %v1219, 0.0
    %v1221 = vmax.f32 %v1215, %v1220
    %v1222 = vlaneseq
    %v1223 = vshrl.u32 %v1222, 7
    %v1224 = vsub.s32 5, %v1223
    %v1225 = vrot.slane %v1191, %v1224
    %v1226 = vsel %vm816, %v1225, 0.0
    %v1227 = vmax.f32 %v1221, %v1226
    %v1228 = vlaneseq
    %v1229 = vshrl.u32 %v1228, 7
    %v1230 = vsub.s32 6, %v1229
    %v1231 = vrot.slane %v1191, %v1230
    %v1232 = vsel %vm826, %v1231, 0.0
    %v1233 = vmax.f32 %v1227, %v1232
    %v1234 = vlaneseq
    %v1235 = vshrl.u32 %v1234, 7
    %v1236 = vsub.s32 7, %v1235
    %v1237 = vrot.slane %v1191, %v1236
    %v1238 = vsel %vm836, %v1237, 0.0
    %v1239 = vmax.f32 %v1233, %v1238
    %s1240 = scalar_lea.vmem [#allocation11], 64
    %v1241 = vld [vmem:[%s1240] sm:$0xf]
    %v1242 = vld [vmem:[%s1240 + $0x4] sm:$0xf]
    %v1243 = vld [vmem:[%s1240 + $0x8] sm:$0xf]
    %v1244 = vld [vmem:[%s1240 + $0xc] sm:$0xf]
    %v1245 = vld [vmem:[%s1240 + $0x10] sm:$0xf]
    %v1246 = vld [vmem:[%s1240 + $0x14] sm:$0xf]
    %v1247 = vld [vmem:[%s1240 + $0x18] sm:$0xf]
    %v1248 = vld [vmem:[%s1240 + $0x1c] sm:$0xf]
    %v1249 = vld [vmem:[%s1240 + $0x20] sm:$0xf]
    %v1250 = vld [vmem:[%s1240 + $0x24] sm:$0xf]
    %v1251 = vld [vmem:[%s1240 + $0x28] sm:$0xf]
    %v1252 = vld [vmem:[%s1240 + $0x2c] sm:$0xf]
    %v1253 = vld [vmem:[%s1240 + $0x30] sm:$0xf]
    %v1254 = vld [vmem:[%s1240 + $0x34] sm:$0xf]
    %v1255 = vld [vmem:[%s1240 + $0x38] sm:$0xf]
    %v1256 = vld [vmem:[%s1240 + $0x3c] sm:$0xf]
    %v1257 = vpack.c.bf16 %v1239, %v1239
    %s1258 = scalar_lea.vmem [#allocation13], 64
    %v1259 = vld [vmem:[%s1258] sm:$0xf]
    %v1260 = vld [vmem:[%s1258 + $0x4] sm:$0xf]
    %v1261 = vld [vmem:[%s1258 + $0x8] sm:$0xf]
    %v1262 = vld [vmem:[%s1258 + $0xc] sm:$0xf]
    %v1263 = vld [vmem:[%s1258 + $0x10] sm:$0xf]
    %v1264 = vld [vmem:[%s1258 + $0x14] sm:$0xf]
    %v1265 = vld [vmem:[%s1258 + $0x18] sm:$0xf]
    %v1266 = vld [vmem:[%s1258 + $0x1c] sm:$0xf]
    %v1267 = vld [vmem:[%s1258 + $0x20] sm:$0xf]
    %v1268 = vld [vmem:[%s1258 + $0x24] sm:$0xf]
    %v1269 = vld [vmem:[%s1258 + $0x28] sm:$0xf]
    %v1270 = vld [vmem:[%s1258 + $0x2c] sm:$0xf]
    %v1271 = vld [vmem:[%s1258 + $0x30] sm:$0xf]
    %v1272 = vld [vmem:[%s1258 + $0x34] sm:$0xf]
    %v1273 = vld [vmem:[%s1258 + $0x38] sm:$0xf]
    %v1274 = vld [vmem:[%s1258 + $0x3c] sm:$0xf]
    %v1291 = vunpack.c.l.b16 %v1259
    %v1292 = vunpack.c.l.b16 %v1260
    %v1293 = vunpack.c.l.b16 %v1261
    %v1294 = vunpack.c.l.b16 %v1262
    %v1295 = vunpack.c.l.b16 %v1263
    %v1296 = vunpack.c.l.b16 %v1264
    %v1297 = vunpack.c.l.b16 %v1265
    %v1298 = vunpack.c.l.b16 %v1266
    %v1299 = vunpack.c.l.b16 %v1267
    %v1300 = vunpack.c.l.b16 %v1268
    %v1301 = vunpack.c.l.b16 %v1269
    %v1302 = vunpack.c.l.b16 %v1270
    %v1303 = vunpack.c.l.b16 %v1271
    %v1304 = vunpack.c.l.b16 %v1272
    %v1305 = vunpack.c.l.b16 %v1273
    %v1306 = vunpack.c.l.b16 %v1274
    %v1307 = vpack.c.b16 %v1292, %v1291
    %v1308 = vpack.c.b16 %v1294, %v1293
    %v1309 = vpack.c.b16 %v1296, %v1295
    %v1310 = vpack.c.b16 %v1298, %v1297
    %v1311 = vpack.c.b16 %v1300, %v1299
    %v1312 = vpack.c.b16 %v1302, %v1301
    %v1313 = vpack.c.b16 %v1304, %v1303
    %v1314 = vpack.c.b16 %v1306, %v1305
    %1323 = vmatprep.subr.bf16.mxu0 0
    %1324 = vmatpush1.bf16.msra.mxu0 %v1314
    %1325 = vmatprep.subr.bf16.mxu0 0
    %1326 = vmatpush1.bf16.msra.mxu0 %v1313
    %1327 = vmatprep.subr.bf16.mxu0 0
    %1328 = vmatpush1.bf16.msra.mxu0 %v1312
    %1329 = vmatprep.subr.bf16.mxu0 0
    %1330 = vmatpush1.bf16.msra.mxu0 %v1311
    %1331 = vmatprep.subr.bf16.mxu0 0
    %1332 = vmatpush1.bf16.msra.mxu0 %v1310
    %1333 = vmatprep.subr.bf16.mxu0 0
    %1334 = vmatpush1.bf16.msra.mxu0 %v1309
    %1335 = vmatprep.subr.bf16.mxu0 0
    %1336 = vmatpush1.bf16.msra.mxu0 %v1308
    %1337 = vmatprep.subr.bf16.mxu0 0
    %1338 = vmatpush1.bf16.msra.mxu0 %v1307
    %1339 = vmatprep.subr.bf16.mxu0 0
    %1340 = vmatpush2.bf16.msra.mxu0 0
    %1341 = vmatprep.subr.bf16.mxu0 0
    %1342 = vmatpush2.bf16.msra.mxu0 0
    %1343 = vmatprep.subr.bf16.mxu0 0
    %1344 = vmatpush2.bf16.msra.mxu0 0
    %1345 = vmatprep.subr.bf16.mxu0 0
    %1346 = vmatpush2.bf16.msra.mxu0 0
    %1347 = vmatprep.subr.bf16.mxu0 0
    %1348 = vmatpush2.bf16.msra.mxu0 0
    %1349 = vmatprep.subr.bf16.mxu0 0
    %1350 = vmatpush2.bf16.msra.mxu0 0
    %1351 = vmatprep.subr.bf16.mxu0 0
    %1352 = vmatpush2.bf16.msra.mxu0 0
    %1353 = vmatprep.subr.bf16.mxu0 0
    %1354 = vmatpush2.bf16.msra.mxu0 0
    %1355 = vmatprep.mubr.bf16.mxu0 0
    %1356 = vmatmul.mubr.bf16.gmra.mxu0 %v1257
    %v1357 = vpop.f32.mrf.mxu0
    %v1358 = vadd.f32 0.0, %v1357
    %v1359 = vpop.f32.mrf.mxu0
    %v1360 = vpop.f32.mrf.mxu0
    %v1361 = vpop.f32.mrf.mxu0
    %1362 = vdwg.mxu0
    %v1379 = vunpack.c.l.b16 %v1241
    %v1380 = vunpack.c.l.b16 %v1242
    %v1381 = vunpack.c.l.b16 %v1243
    %v1382 = vunpack.c.l.b16 %v1244
    %v1383 = vunpack.c.l.b16 %v1245
    %v1384 = vunpack.c.l.b16 %v1246
    %v1385 = vunpack.c.l.b16 %v1247
    %v1386 = vunpack.c.l.b16 %v1248
    %v1387 = vunpack.c.l.b16 %v1249
    %v1388 = vunpack.c.l.b16 %v1250
    %v1389 = vunpack.c.l.b16 %v1251
    %v1390 = vunpack.c.l.b16 %v1252
    %v1391 = vunpack.c.l.b16 %v1253
    %v1392 = vunpack.c.l.b16 %v1254
    %v1393 = vunpack.c.l.b16 %v1255
    %v1394 = vunpack.c.l.b16 %v1256
    %v1395 = vpack.c.b16 %v1380, %v1379
    %v1396 = vpack.c.b16 %v1382, %v1381
    %v1397 = vpack.c.b16 %v1384, %v1383
    %v1398 = vpack.c.b16 %v1386, %v1385
    %v1399 = vpack.c.b16 %v1388, %v1387
    %v1400 = vpack.c.b16 %v1390, %v1389
    %v1401 = vpack.c.b16 %v1392, %v1391
    %v1402 = vpack.c.b16 %v1394, %v1393
    %1411 = vmatprep.subr.bf16.mxu0 0
    %1412 = vmatpush1.bf16.msra.mxu0 %v1402
    %1413 = vmatprep.subr.bf16.mxu0 0
    %1414 = vmatpush1.bf16.msra.mxu0 %v1401
    %1415 = vmatprep.subr.bf16.mxu0 0
    %1416 = vmatpush1.bf16.msra.mxu0 %v1400
    %1417 = vmatprep.subr.bf16.mxu0 0
    %1418 = vmatpush1.bf16.msra.mxu0 %v1399
    %1419 = vmatprep.subr.bf16.mxu0 0
    %1420 = vmatpush1.bf16.msra.mxu0 %v1398
    %1421 = vmatprep.subr.bf16.mxu0 0
    %1422 = vmatpush1.bf16.msra.mxu0 %v1397
    %1423 = vmatprep.subr.bf16.mxu0 0
    %1424 = vmatpush1.bf16.msra.mxu0 %v1396
    %1425 = vmatprep.subr.bf16.mxu0 0
    %1426 = vmatpush1.bf16.msra.mxu0 %v1395
    %1427 = vmatprep.subr.bf16.mxu0 0
    %1428 = vmatpush2.bf16.msra.mxu0 0
    %1429 = vmatprep.subr.bf16.mxu0 0
    %1430 = vmatpush2.bf16.msra.mxu0 0
    %1431 = vmatprep.subr.bf16.mxu0 0
    %1432 = vmatpush2.bf16.msra.mxu0 0
    %1433 = vmatprep.subr.bf16.mxu0 0
    %1434 = vmatpush2.bf16.msra.mxu0 0
    %1435 = vmatprep.subr.bf16.mxu0 0
    %1436 = vmatpush2.bf16.msra.mxu0 0
    %1437 = vmatprep.subr.bf16.mxu0 0
    %1438 = vmatpush2.bf16.msra.mxu0 0
    %1439 = vmatprep.subr.bf16.mxu0 0
    %1440 = vmatpush2.bf16.msra.mxu0 0
    %1441 = vmatprep.subr.bf16.mxu0 0
    %1442 = vmatpush2.bf16.msra.mxu0 0
    %1443 = vmatprep.mubr.bf16.mxu0 0
    %1444 = vmatmul.mubr.bf16.gmra.mxu0 %v1081
    %v1445 = vpop.f32.mrf.mxu0
    %v1446 = vadd.f32 %v1358, %v1445
    %v1447 = vpop.f32.mrf.mxu0
    %v1448 = vpop.f32.mrf.mxu0
    %v1449 = vpop.f32.mrf.mxu0
    %1450 = vdwg.mxu0
    %v1451 = vlaneseq
    %v1452 = vshrl.u32 %v1451, 7
    %v1453 = vsub.s32 5, %v1452
    %v1454 = vrot.slane %v151, %v1453
    %v1455 = vadd.f32 %v1446, %v1454
    %v1456 = vadd.f32 %v1455, %v1080
    %1457 = vadd.xlane.f32.xlu0 %v1456
    %v1458 = vpop.xlane.xlu0 %1457
    %v1459 = vmul.f32 %v1458, %v1060
    %v1460 = vsub.f32 %v1456, %v1459
    %v1461 = vmul.f32 %v1460, %v1460
    %1462 = vadd.xlane.f32.xlu0 %v1461
    %v1463 = vpop.xlane.xlu0 %1462
    %v1464 = vmul.f32 %v1463, %v1060
    %v1465 = vadd.f32 %v1464, 1e-05
    %v1466 = vrsqrt.pop %v1465
    %v1467 = vmul.f32 %v1460, %v1466
    %v1468 = vlaneseq
    %v1469 = vshrl.u32 %v1468, 7
    %v1470 = vsub.s32 6, %v1469
    %v1471 = vrot.slane %v151, %v1470
    %v1472 = vmul.f32 %v1467, %v1471
    %v1473 = vlaneseq
    %v1474 = vshrl.u32 %v1473, 7
    %v1475 = vsub.s32 7, %v1474
    %v1476 = vrot.slane %v151, %v1475
    %v1477 = vadd.f32 %v1472, %v1476
    %v1478 = vld [vmem:[%s9] sm:$0xff]
    %v1479 = vld [vmem:[%s9 + $0x8] sm:$0xff]
    %v1480 = vld [vmem:[%s9 + $0x10] sm:$0xff]
    %v1481 = vld [vmem:[%s9 + $0x18] sm:$0xff]
    %v1482 = vld [vmem:[%s9 + $0x20] sm:$0xff]
    %v1483 = vld [vmem:[%s9 + $0x28] sm:$0xff]
    %v1484 = vld [vmem:[%s9 + $0x30] sm:$0xff]
    %v1485 = vld [vmem:[%s9 + $0x38] sm:$0xff]
    %v1486 = vld [vmem:[%s9 + $0x40] sm:$0xff]
    %v1487 = vld [vmem:[%s9 + $0x48] sm:$0xff]
    %v1488 = vld [vmem:[%s9 + $0x50] sm:$0xff]
    %v1489 = vld [vmem:[%s9 + $0x58] sm:$0xff]
    %v1490 = vld [vmem:[%s9 + $0x60] sm:$0xff]
    %v1491 = vld [vmem:[%s9 + $0x68] sm:$0xff]
    %v1492 = vld [vmem:[%s9 + $0x70] sm:$0xff]
    %v1493 = vld [vmem:[%s9 + $0x78] sm:$0xff]
    %v1494 = vlaneseq
    %v1495 = vshrl.u32 %v1494, 7
    %v1496 = vsub.s32 0, %v1495
    %v1497 = vrot.slane %v152, %v1496
    %1498 = vmatprep.subr.mxu0 0.0
    %1499 = vmatpush1.msra.mxu0 %v1493
    %1500 = vmatprep.subr.mxu0 0.0
    %1501 = vmatpush1.msra.mxu0 %v1492
    %1502 = vmatprep.subr.mxu0 0.0
    %1503 = vmatpush1.msra.mxu0 %v1491
    %1504 = vmatprep.subr.mxu0 0.0
    %1505 = vmatpush1.msra.mxu0 %v1490
    %1506 = vmatprep.subr.mxu0 0.0
    %1507 = vmatpush1.msra.mxu0 %v1489
    %1508 = vmatprep.subr.mxu0 0.0
    %1509 = vmatpush1.msra.mxu0 %v1488
    %1510 = vmatprep.subr.mxu0 0.0
    %1511 = vmatpush1.msra.mxu0 %v1487
    %1512 = vmatprep.subr.mxu0 0.0
    %1513 = vmatpush1.msra.mxu0 %v1486
    %1514 = vmatprep.subr.mxu0 0.0
    %1515 = vmatpush1.msra.mxu0 %v1485
    %1516 = vmatprep.subr.mxu0 0.0
    %1517 = vmatpush1.msra.mxu0 %v1484
    %1518 = vmatprep.subr.mxu0 0.0
    %1519 = vmatpush1.msra.mxu0 %v1483
    %1520 = vmatprep.subr.mxu0 0.0
    %1521 = vmatpush1.msra.mxu0 %v1482
    %1522 = vmatprep.subr.mxu0 0.0
    %1523 = vmatpush1.msra.mxu0 %v1481
    %1524 = vmatprep.subr.mxu0 0.0
    %1525 = vmatpush1.msra.mxu0 %v1480
    %1526 = vmatprep.subr.mxu0 0.0
    %1527 = vmatpush1.msra.mxu0 %v1479
    %1528 = vmatprep.subr.mxu0 0.0
    %1529 = vmatpush1.msra.mxu0 %v1478
    %1530 = vmatprep.subr.mxu0 0.0
    %1531 = vmatpush2.msra.mxu0 0.0
    %1532 = vmatprep.subr.mxu0 0.0
    %1533 = vmatpush2.msra.mxu0 0.0
    %1534 = vmatprep.subr.mxu0 0.0
    %1535 = vmatpush2.msra.mxu0 0.0
    %1536 = vmatprep.subr.mxu0 0.0
    %1537 = vmatpush2.msra.mxu0 0.0
    %1538 = vmatprep.subr.mxu0 0.0
    %1539 = vmatpush2.msra.mxu0 0.0
    %1540 = vmatprep.subr.mxu0 0.0
    %1541 = vmatpush2.msra.mxu0 0.0
    %1542 = vmatprep.subr.mxu0 0.0
    %1543 = vmatpush2.msra.mxu0 0.0
    %1544 = vmatprep.subr.mxu0 0.0
    %1545 = vmatpush2.msra.mxu0 0.0
    %1546 = vmatprep.subr.mxu0 0.0
    %1547 = vmatpush2.msra.mxu0 0.0
    %1548 = vmatprep.subr.mxu0 0.0
    %1549 = vmatpush2.msra.mxu0 0.0
    %1550 = vmatprep.subr.mxu0 0.0
    %1551 = vmatpush2.msra.mxu0 0.0
    %1552 = vmatprep.subr.mxu0 0.0
    %1553 = vmatpush2.msra.mxu0 0.0
    %1554 = vmatprep.subr.mxu0 0.0
    %1555 = vmatpush2.msra.mxu0 0.0
    %1556 = vmatprep.subr.mxu0 0.0
    %1557 = vmatpush2.msra.mxu0 0.0
    %1558 = vmatprep.subr.mxu0 0.0
    %1559 = vmatpush2.msra.mxu0 0.0
    %1560 = vmatprep.subr.mxu0 0.0
    %1561 = vmatpush2.msra.mxu0 0.0
    %1562 = vmatprep.mubr.f32.mxu0 0.0
    %1563 = vmatmul.mubr.f32.gmra.mxu0 %v1477
    %v1564 = vpop.f32.mrf.mxu0
    %v1565 = vadd.f32 %v1497, %v1564
    %v1566 = vpop.f32.mrf.mxu0
    %1567 = vdwg.mxu0
    %vm1568 = vcmask 31744
    %1569 = vst.msk [vmem:[%s11] sm:$0xff] %vm1568, %v1565
    // Predicated region
    $region78: #{tpu_custom_call.1} parent=1 // pred_check
      _
    $region79: #{tpu_custom_call.1} parent=1 // pred_check_branch
      %1571 = sbr.rel (0) target = $region81
    $region80: #{tpu_custom_call.1} parent=1 // pred_region
      _
    $region81: #{tpu_custom_call.1} parent=1 // pred_fallthru
      _
    // Predicated region
    $region82: #{tpu_custom_call.1} parent=1 // pred_check
      _
    $region83: #{tpu_custom_call.1} parent=1 // pred_check_branch
      %1573 = sbr.rel (0) target = $region85
    $region84: #{tpu_custom_call.1} parent=1 // pred_region
      %s1575 = ssub.s32 128, 128
      %1576 = vsyncadd [#allocation4], %s1575
      %s1578 = sshll.u32 [#allocation16], 4
      %s1579 = int_to_ptr.vmem [resolvable:$true] %s1578
      %1581 = dma.vmem_to_hbm [thread:$0]  %s1579, 128, %s12, [#allocation4]
    $region85: #{tpu_custom_call.1} parent=1 // pred_fallthru
      _
    // Predicated region
    $region86: #{tpu_custom_call.1} parent=1 // pred_check
      _
    $region87: #{tpu_custom_call.1} parent=1 // pred_check_branch
      %1583 = sbr.rel (0) target = $region89
    $region88: #{tpu_custom_call.1} parent=1 // pred_region
      _
    $region89: #{tpu_custom_call.1} parent=1 // pred_fallthru
      _
    // Predicated region
    $region90: #{tpu_custom_call.1} parent=1 // pred_check
      _
    $region91: #{tpu_custom_call.1} parent=1 // pred_check_branch
      %1585 = sbr.rel (0) target = $region93
    $region92: #{tpu_custom_call.1} parent=1 // pred_region
      %1586 = dma.done [#allocation4], 128
    $region93: #{tpu_custom_call.1} parent=1 // pred_fallthru
      _
    %1587 = vsyncpa [#allocation3], 1
    %1588 = vsyncpa [#allocation6], 1
    %1589 = vsyncpa [#allocation9], 1
    %1590 = vsyncpa [#allocation12], 1
    %1591 = vsyncpa [#allocation15], 1
    %1592 = vsyncpa [#allocation4], 1

</llo_original>
